<compile_context>
chip_gen: v5e
topology: v5e:2x2
jax: 0.10.0
libtpu: 0.0.40
codegen_flags: <defaults>
</compile_context>

<pallas_src>
import itertools

import jax
import jax.numpy as jnp
import numpy as np
from jax import lax
from jax.experimental import pallas as pl
from jax.experimental.pallas import tpu as pltpu


# ----------------------------- Pallas kernels ------------------------------ #

def _matmul_stats_kernel(a_ref, b_ref, y_ref, sum_ref, sq_ref, s_acc, q_acc):
    """y = B @ A (bf16 operands, f32 acc); accumulate per-row sum / sum-of-squares."""
    i = pl.program_id(1)                      # M-block index within this core's range

    @pl.when(i == 0)
    def _():
        s_acc[...] = jnp.zeros_like(s_acc)
        q_acc[...] = jnp.zeros_like(q_acc)

    # (32, K) @ (K, tm) -> (32, tm); single MXU push, f32 accumulation.
    y = jnp.dot(b_ref[...], a_ref[...], preferred_element_type=jnp.float32)
    y_ref[...] = y.astype(y_ref.dtype)        # bf16 intermediate read by pass 2

    # Per-(parity, channel) partial batch statistics, f32, in VMEM scratch.
    s_acc[...] += jnp.sum(y, axis=1, keepdims=True)
    q_acc[...] += jnp.sum(y * y, axis=1, keepdims=True)

    @pl.when(i == pl.num_programs(1) - 1)     # write per-core partials exactly once
    def _():
        sum_ref[...] = s_acc[...]
        sq_ref[...] = q_acc[...]


def _bn_relu_kernel(y_ref, scale_ref, shift_ref, o_ref):
    """out = max(y * scale + shift, 0): one FMA + max per element."""
    y = y_ref[...].astype(jnp.float32)
    o_ref[...] = jnp.maximum(y * scale_ref[...] + shift_ref[...], 0.0).astype(o_ref.dtype)


# --------------------------------- Glue ------------------------------------ #

def _round_up(x, m):
    return (x + m - 1) // m * m


def _vmem_budget_bytes():
    """Conservative VMEM budget, generation-aware when queryable (64 MiB-safe on v7x)."""
    try:
        cap = int(pltpu.get_tpu_info().vmem_capacity_bytes)
    except Exception:
        cap = 64 * 1024 * 1024            # smallest current per-core capacity (v7x)
    return max(32 * 1024 * 1024, min(cap * 3 // 4, 100 * 1024 * 1024))


def _choose_tile(m, bytes_per_col, budget,
                 candidates=(4096, 2048, 1024, 512, 256, 128)):
    """Largest lane tile dividing m whose double-buffered working set fits budget."""
    fitting = [t for t in candidates if m % t == 0 and t * bytes_per_col <= budget]
    if not fitting:
        return 128 if m % 128 == 0 else m
    multi = [t for t in fitting if m // t >= 2]     # prefer >= 2 grid steps (pipelining)
    return (multi or fitting)[0]


def _build_tap_operand(x):
    """x: (N, Cin, D, H, W) -> A: (Cin*27, N*D*H*W) bf16 over 27 spatial shifts."""
    n, cin, d, h, w = x.shape
    xp = jnp.pad(x.astype(jnp.bfloat16), ((0, 0), (0, 0), (1, 1), (1, 1), (1, 1)))
    slabs = [xp[:, :, sd:sd + d, sh:sh + h, sw:sw + w]
             for sd, sh, sw in itertools.product(range(3), repeat=3)]
    a = jnp.stack(slabs, axis=2)                   # (N, Cin, 27, D, H, W)
    a = a.transpose(1, 2, 0, 3, 4, 5)              # (Cin, 27, N, D, H, W)
    return a.reshape(cin * 27, n * d * h * w)


def _build_polyphase_weight(w):
    """w: (Cin, Cout, 4, 4, 4) [PyTorch ConvTranspose3d layout] -> (8*Cout, Cin*27).

    Row order (pd, ph, pw, cout); column order (cin, sd, sh, sw).  For output
    parity p along one dim, shift s in {p, p+1} contributes kernel tap
    k = p + 3 - 2*s; all other (of the 3) shifts get zero weight.
    """
    cin, cout = w.shape[0], w.shape[1]
    rows = []
    for pd, ph, pw in itertools.product(range(2), repeat=3):
        taps = jnp.zeros((cout, cin, 3, 3, 3), w.dtype)
        for sd in (pd, pd + 1):
            for sh in (ph, ph + 1):
                for sw in (pw, pw + 1):
                    kd = pd + 3 - 2 * sd
                    kh = ph + 3 - 2 * sh
                    kw = pw + 3 - 2 * sw
                    taps = taps.at[:, :, sd, sh, sw].set(w[:, :, kd, kh, kw].T)
        rows.append(taps.reshape(cout, cin * 27))
    return jnp.concatenate(rows, axis=0)           # (8*Cout, Cin*27)


def new_up_transition(x, w, bias, gamma, beta, *, eps=1e-5):
    """Forward of NewUpTransition.  x: (N, Cin, D, H, W); w: (Cin, Cout, 4, 4, 4).

    `bias` is accepted for API parity but is exactly absorbed by the batch-stat
    mean subtraction of ContBatchNorm3d, so it is not used.
    """
    del bias
    n, cin, d, h, w_sp = x.shape
    cout = w.shape[1]
    rows = 8 * cout                               # parity (8) x output channel
    m = n * d * h * w_sp                          # rows per parity class
    k = cin * 27

    k_pad = _round_up(k, 8)
    m_pad = _round_up(m, 128)

    a = _build_tap_operand(x)                                        # (K, M) bf16
    a = jnp.pad(a, ((0, k_pad - k), (0, m_pad - m)))
    b = jnp.pad(_build_polyphase_weight(w).astype(jnp.bfloat16),
                ((0, 0), (0, k_pad - k)))                            # (32, K_pad) bf16

    budget = _vmem_budget_bytes()

    # ---- Pass 1: matmul + per-(parity,channel) batch statistics ---- #
    # Per-lane working set: double-buffered bf16 A column + bf16 y column.
    tm1 = _choose_tile(m_pad, 4 * k_pad + 4 * rows, budget // 2)
    nb = m_pad // tm1
    nsplit = 2 if nb % 2 == 0 else 1              # megacore split (v7x); harmless elsewhere
    nbc = nb // nsplit

    flops = 2 * rows * k_pad * m_pad
    bytes_acc = k_pad * m_pad * 2 + rows * k_pad * 2 + rows * m_pad * 2

    y, s1, s2 = pl.pallas_call(
        _matmul_stats_kernel,
        out_shape=(jax.ShapeDtypeStruct((rows, m_pad), jnp.bfloat16),
                   jax.ShapeDtypeStruct((nsplit, rows, 1), jnp.float32),
                   jax.ShapeDtypeStruct((nsplit, rows, 1), jnp.float32)),
        grid=(nsplit, nbc),
        in_specs=[pl.BlockSpec((k_pad, tm1), lambda c, i: (0, c * nbc + i)),
                  pl.BlockSpec((rows, k_pad), lambda c, i: (0, 0))],
        out_specs=(pl.BlockSpec((rows, tm1), lambda c, i: (0, c * nbc + i)),
                   pl.BlockSpec((None, rows, 1), lambda c, i: (c, 0, 0)),
                   pl.BlockSpec((None, rows, 1), lambda c, i: (c, 0, 0))),
        scratch_shapes=[pltpu.VMEM((rows, 1), jnp.float32),
                        pltpu.VMEM((rows, 1), jnp.float32)],
        compiler_params=pltpu.CompilerParams(
            dimension_semantics=("parallel", "arbitrary"),
            vmem_limit_bytes=budget),
        cost_estimate=pl.CostEstimate(flops=flops, transcendentals=0,
                                      bytes_accessed=bytes_acc),
    )(a, b)

    # ---- Per-channel scale / shift from batch statistics (training-mode BN) ---- #
    # Zero-padded M columns contribute 0 to the sums; count uses the true M.
    count = jnp.float32(8 * m)                    # = N * 2D * 2H * 2W per channel
    sum_row = jnp.sum(s1, axis=0)[:, 0]           # reduce per-core partials -> (32,)
    sq_row = jnp.sum(s2, axis=0)[:, 0]
    sum_c = sum_row.reshape(8, cout).sum(axis=0)
    sq_c = sq_row.reshape(8, cout).sum(axis=0)
    mean = sum_c / count
    # TODO(synk): E[y^2]-E[y]^2 can cancel when |mean| >> std; with the conv bias
    # dropped the conv output is near zero-mean so plain f32 sums are sufficient.
    var = jnp.maximum(sq_c / count - mean * mean, 0.0)
    scale_c = gamma.astype(jnp.float32) * lax.rsqrt(var + eps)
    shift_c = beta.astype(jnp.float32) - mean * scale_c
    scale_r = jnp.tile(scale_c, 8).reshape(rows, 1)
    shift_r = jnp.tile(shift_c, 8).reshape(rows, 1)

    # ---- Pass 2: normalize + ReLU (pure FMA, mem-bound -> bigger decoupled tiles) ---- #
    tm2 = _choose_tile(m_pad, 8 * rows, budget // 2,
                       candidates=(16384, 8192, 4096, 2048, 1024, 512, 256, 128))
    out2 = pl.pallas_call(
        _bn_relu_kernel,
        out_shape=jax.ShapeDtypeStruct((rows, m_pad), jnp.bfloat16),
        grid=(m_pad // tm2,),
        in_specs=[pl.BlockSpec((rows, tm2), lambda i: (0, i)),
                  pl.BlockSpec((rows, 1), lambda i: (0, 0)),
                  pl.BlockSpec((rows, 1), lambda i: (0, 0))],
        out_specs=pl.BlockSpec((rows, tm2), lambda i: (0, i)),
        compiler_params=pltpu.CompilerParams(
            dimension_semantics=("parallel",),
            vmem_limit_bytes=budget),
    )(y, scale_r, shift_r)

    # Reassemble (pd, ph, pw, Cout, N, D, H, W) -> NCDHW with interleaved parities.
    # Done on the bf16 slab (half the read traffic); the f32 cast fuses with it.
    out = out2[:, :m].reshape(2, 2, 2, cout, n, d, h, w_sp)
    out = out.transpose(4, 3, 5, 0, 6, 1, 7, 2).reshape(n, cout, 2 * d, 2 * h, 2 * w_sp)
    return out.astype(jnp.float32)


def reference(x, w, bias, gamma, beta, eps=1e-5):
    """Pure-JAX reference of the PyTorch forward (for a sanity check)."""
    w_conv = jnp.flip(w, axis=(2, 3, 4)).transpose(1, 0, 2, 3, 4)   # (Cout, Cin, k, k, k)
    y = lax.conv_general_dilated(
        x, w_conv, window_strides=(1, 1, 1),
        padding=[(2, 2)] * 3, lhs_dilation=(2, 2, 2),
        dimension_numbers=('NCDHW', 'OIDHW', 'NCDHW'))
    y = y + bias.reshape(1, -1, 1, 1, 1)
    mean = jnp.mean(y, axis=(0, 2, 3, 4), keepdims=True)
    var = jnp.mean(jnp.square(y - mean), axis=(0, 2, 3, 4), keepdims=True)
    yhat = (y - mean) * lax.rsqrt(var + eps) * gamma.reshape(1, -1, 1, 1, 1) \
        + beta.reshape(1, -1, 1, 1, 1)
    return jnp.maximum(yhat, 0.0)


if __name__ == "__main__":
    key = jax.random.PRNGKey(0)
    kx, kw, kb = jax.random.split(key, 3)

    N, C, D, H, W = 2, 4, 8, 8, 8
    x = jax.random.normal(kx, (N, C, D, H, W), dtype=jnp.float32)

    # Deterministic parameters. In the PyTorch module the xavier init helper
    # matches neither ConvTranspose3d nor ContBatchNorm3d, so the conv keeps a
    # (random) init and BN keeps gamma=1 / beta=0 defaults.
    w = 0.1 * jax.random.normal(kw, (C, C, 4, 4, 4), dtype=jnp.float32)   # (Cin,Cout,k,k,k)
    bias = 0.05 * jax.random.normal(kb, (C,), dtype=jnp.float32)
    gamma = jnp.ones((C,), dtype=jnp.float32)
    beta = jnp.zeros((C,), dtype=jnp.float32)

    fwd = jax.jit(new_up_transition)
    out = jax.block_until_ready(fwd(x, w, bias, gamma, beta))
    assert out.shape == (N, C, 2 * D, 2 * H, 2 * W), out.shape

    # TODO(synk): F.batch_norm(training=True) also updates running_mean/var in
    # place; that side effect does not influence this forward's output and is
    # not materialized here.
    ref = jax.block_until_ready(reference(x, w, bias, gamma, beta))
    np.testing.assert_allclose(np.asarray(out), np.asarray(ref), rtol=5e-2, atol=5e-2)

    print("KERNEL_OK")
</pallas_src>

<mosaic_0001>
module attributes {stable_mosaic.version = 11 : i64} {
  func.func @_bn_relu_kernel(%arg0: i32, %arg1: memref<32x512xbf16, #tpu.memory_space<vmem>>, %arg2: memref<32x1xf32, #tpu.memory_space<vmem>>, %arg3: memref<32x1xf32, #tpu.memory_space<vmem>>, %arg4: memref<32x512xbf16, #tpu.memory_space<vmem>>) attributes {dimension_semantics = [#tpu.dimension_semantics<parallel>], iteration_bounds = array<i64: 2>, scalar_prefetch = 0 : i64, scratch_operands = 0 : i64, tpu.core_type = #tpu.core_type<tc>, window_params = [{transform_indices = @transform_0, window_bounds = array<i64: 32, 512>}, {pipeline_mode = #tpu.pipeline_mode<synchronous>, transform_indices = @transform_1, window_bounds = array<i64: 32, 1>}, {pipeline_mode = #tpu.pipeline_mode<synchronous>, transform_indices = @transform_2, window_bounds = array<i64: 32, 1>}, {transform_indices = @transform_3, window_bounds = array<i64: 32, 512>}]} {
    %c0 = arith.constant 0 : index
    %c0_0 = arith.constant 0 : index
    %0 = vector.load %arg1[%c0, %c0_0] : memref<32x512xbf16, #tpu.memory_space<vmem>>, vector<32x512xbf16>
    %1 = arith.extf %0 : vector<32x512xbf16> to vector<32x512xf32>
    %c0_1 = arith.constant 0 : index
    %c0_2 = arith.constant 0 : index
    %2 = vector.load %arg2[%c0_1, %c0_2] : memref<32x1xf32, #tpu.memory_space<vmem>>, vector<32x1xf32>
    %3 = vector.broadcast %2 : vector<32x1xf32> to vector<32x512xf32>
    %4 = arith.mulf %1, %3 : vector<32x512xf32>
    %c0_3 = arith.constant 0 : index
    %c0_4 = arith.constant 0 : index
    %5 = vector.load %arg3[%c0_3, %c0_4] : memref<32x1xf32, #tpu.memory_space<vmem>>, vector<32x1xf32>
    %6 = vector.broadcast %5 : vector<32x1xf32> to vector<32x512xf32>
    %7 = arith.addf %4, %6 : vector<32x512xf32>
    %cst = arith.constant 0.000000e+00 : f32
    %8 = vector.broadcast %cst : f32 to vector<32x512xf32>
    %9 = arith.maximumf %7, %8 : vector<32x512xf32>
    %10 = arith.truncf %9 : vector<32x512xf32> to vector<32x512xbf16>
    %c0_5 = arith.constant 0 : index
    %c0_6 = arith.constant 0 : index
    %11 = vector.load %arg4[%c0_5, %c0_6] : memref<32x512xbf16, #tpu.memory_space<vmem>>, vector<32x512xbf16>
    tpu.vector_store %arg4[%c0_5, %c0_6], %10 {strides = array<i32>} : memref<32x512xbf16, #tpu.memory_space<vmem>>, vector<32x512xbf16>,
    return
  }
  func.func @transform_0(%arg0: i32) -> (i32, i32) {
    %c0_i32 = arith.constant 0 : i32
    %c0_i32_0 = arith.constant 0 : i32
    return %c0_i32, %arg0 : i32, i32
  }
  func.func @transform_1(%arg0: i32) -> (i32, i32) {
    %c0_i32 = arith.constant 0 : i32
    %c0_i32_0 = arith.constant 0 : i32
    %c0_i32_1 = arith.constant 0 : i32
    return %c0_i32, %c0_i32_0 : i32, i32
  }
  func.func @transform_2(%arg0: i32) -> (i32, i32) {
    %c0_i32 = arith.constant 0 : i32
    %c0_i32_0 = arith.constant 0 : i32
    %c0_i32_1 = arith.constant 0 : i32
    return %c0_i32, %c0_i32_0 : i32, i32
  }
  func.func @transform_3(%arg0: i32) -> (i32, i32) {
    %c0_i32 = arith.constant 0 : i32
    %c0_i32_0 = arith.constant 0 : i32
    return %c0_i32, %arg0 : i32, i32
  }
}

module attributes {stable_mosaic.version = 11 : i64} {
  func.func @_matmul_stats_kernel(%arg0: i32, %arg1: i32, %arg2: memref<112x512xbf16, #tpu.memory_space<vmem>>, %arg3: memref<32x112xbf16, #tpu.memory_space<vmem>>, %arg4: memref<32x512xbf16, #tpu.memory_space<vmem>>, %arg5: memref<1x32x1xf32, #tpu.memory_space<vmem>>, %arg6: memref<1x32x1xf32, #tpu.memory_space<vmem>>, %arg7: memref<32x1xf32, #tpu.memory_space<vmem>>, %arg8: memref<32x1xf32, #tpu.memory_space<vmem>>) attributes {dimension_semantics = [#tpu.dimension_semantics<parallel>, #tpu.dimension_semantics<arbitrary>], iteration_bounds = array<i64: 2, 1>, scalar_prefetch = 0 : i64, scratch_operands = 2 : i64, tpu.core_type = #tpu.core_type<tc>, window_params = [{transform_indices = @transform_0, window_bounds = array<i64: 112, 512>}, {pipeline_mode = #tpu.pipeline_mode<synchronous>, transform_indices = @transform_1, window_bounds = array<i64: 32, 112>}, {transform_indices = @transform_2, window_bounds = array<i64: 32, 512>}, {transform_indices = @transform_3, window_bounds = array<i64: 1, 32, 1>}, {transform_indices = @transform_4, window_bounds = array<i64: 1, 32, 1>}]} {
    %c0_i32 = arith.constant 0 : i32
    %0 = arith.cmpi eq, %arg1, %c0_i32 : i32
    %1 = arith.extui %0 : i1 to i32
    %c0_i32_0 = arith.constant 0 : i32
    %2 = arith.cmpi ne, %1, %c0_i32_0 : i32
    scf.if %2 {
      %cst_18 = arith.constant 0.000000e+00 : f32
      %22 = vector.broadcast %cst_18 : f32 to vector<32x1xf32>
      %c0_19 = arith.constant 0 : index
      %c0_20 = arith.constant 0 : index
      %23 = vector.load %arg7[%c0_19, %c0_20] : memref<32x1xf32, #tpu.memory_space<vmem>>, vector<32x1xf32>
      tpu.vector_store %arg7[%c0_19, %c0_20], %22 {strides = array<i32>} : memref<32x1xf32, #tpu.memory_space<vmem>>, vector<32x1xf32>,
      %cst_21 = arith.constant 0.000000e+00 : f32
      %24 = vector.broadcast %cst_21 : f32 to vector<32x1xf32>
      %c0_22 = arith.constant 0 : index
      %c0_23 = arith.constant 0 : index
      %25 = vector.load %arg8[%c0_22, %c0_23] : memref<32x1xf32, #tpu.memory_space<vmem>>, vector<32x1xf32>
      tpu.vector_store %arg8[%c0_22, %c0_23], %24 {strides = array<i32>} : memref<32x1xf32, #tpu.memory_space<vmem>>, vector<32x1xf32>,
    } else {
    }
    %c0 = arith.constant 0 : index
    %c0_1 = arith.constant 0 : index
    %3 = vector.load %arg3[%c0, %c0_1] : memref<32x112xbf16, #tpu.memory_space<vmem>>, vector<32x112xbf16>
    %c0_2 = arith.constant 0 : index
    %c0_3 = arith.constant 0 : index
    %4 = vector.load %arg2[%c0_2, %c0_3] : memref<112x512xbf16, #tpu.memory_space<vmem>>, vector<112x512xbf16>
    %cst = arith.constant dense<0.000000e+00> : vector<32x512xf32>
    %5 = tpu.matmul %3, %4, %cst {dimension_numbers = #tpu.dot_dimension_numbers<[1], [0], [0], [1], [0, 0, 1, 1], [], []>} : vector<32x112xbf16>, vector<112x512xbf16>, vector<32x512xf32> -> vector<32x512xf32>
    %6 = arith.truncf %5 : vector<32x512xf32> to vector<32x512xbf16>
    %c0_4 = arith.constant 0 : index
    %c0_5 = arith.constant 0 : index
    %7 = vector.load %arg4[%c0_4, %c0_5] : memref<32x512xbf16, #tpu.memory_space<vmem>>, vector<32x512xbf16>
    tpu.vector_store %arg4[%c0_4, %c0_5], %6 {strides = array<i32>} : memref<32x512xbf16, #tpu.memory_space<vmem>>, vector<32x512xbf16>,
    %c0_6 = arith.constant 0 : index
    %c0_7 = arith.constant 0 : index
    %8 = vector.load %arg7[%c0_6, %c0_7] : memref<32x1xf32, #tpu.memory_space<vmem>>, vector<32x1xf32>
    %cst_8 = arith.constant dense<0.000000e+00> : vector<32xf32>
    %9 = vector.multi_reduction <add>, %5, %cst_8 [1] : vector<32x512xf32> to vector<32xf32>
    %10 = vector.shape_cast %9 : vector<32xf32> to vector<32x1xf32>
    %11 = arith.addf %8, %10 : vector<32x1xf32>
    %c0_9 = arith.constant 0 : index
    %c0_10 = arith.constant 0 : index
    %12 = vector.load %arg7[%c0_9, %c0_10] : memref<32x1xf32, #tpu.memory_space<vmem>>, vector<32x1xf32>
    tpu.vector_store %arg7[%c0_9, %c0_10], %11 {strides = array<i32>} : memref<32x1xf32, #tpu.memory_space<vmem>>, vector<32x1xf32>,
    %c0_11 = arith.constant 0 : index
    %c0_12 = arith.constant 0 : index
    %13 = vector.load %arg8[%c0_11, %c0_12] : memref<32x1xf32, #tpu.memory_space<vmem>>, vector<32x1xf32>
    %14 = arith.mulf %5, %5 : vector<32x512xf32>
    %cst_13 = arith.constant dense<0.000000e+00> : vector<32xf32>
    %15 = vector.multi_reduction <add>, %14, %cst_13 [1] : vector<32x512xf32> to vector<32xf32>
    %16 = vector.shape_cast %15 : vector<32xf32> to vector<32x1xf32>
    %17 = arith.addf %13, %16 : vector<32x1xf32>
    %c0_14 = arith.constant 0 : index
    %c0_15 = arith.constant 0 : index
    %18 = vector.load %arg8[%c0_14, %c0_15] : memref<32x1xf32, #tpu.memory_space<vmem>>, vector<32x1xf32>
    tpu.vector_store %arg8[%c0_14, %c0_15], %17 {strides = array<i32>} : memref<32x1xf32, #tpu.memory_space<vmem>>, vector<32x1xf32>,
    %c0_i32_16 = arith.constant 0 : i32
    %19 = arith.cmpi eq, %arg1, %c0_i32_16 : i32
    %20 = arith.extui %19 : i1 to i32
    %c0_i32_17 = arith.constant 0 : i32
    %21 = arith.cmpi ne, %20, %c0_i32_17 : i32
    scf.if %21 {
      %c0_18 = arith.constant 0 : index
      %c0_19 = arith.constant 0 : index
      %22 = vector.load %arg7[%c0_18, %c0_19] : memref<32x1xf32, #tpu.memory_space<vmem>>, vector<32x1xf32>
      %c0_20 = arith.constant 0 : index
      %c0_21 = arith.constant 0 : index
      %c0_22 = arith.constant 0 : index
      %23 = vector.load %arg5[%c0_20, %c0_21, %c0_22] : memref<1x32x1xf32, #tpu.memory_space<vmem>>, vector<1x32x1xf32>
      %24 = vector.shape_cast %23 : vector<1x32x1xf32> to vector<32x1xf32>
      %25 = vector.shape_cast %22 : vector<32x1xf32> to vector<1x32x1xf32>
      tpu.vector_store %arg5[%c0_20, %c0_21, %c0_22], %25 {strides = array<i32>} : memref<1x32x1xf32, #tpu.memory_space<vmem>>, vector<1x32x1xf32>,
      %c0_23 = arith.constant 0 : index
      %c0_24 = arith.constant 0 : index
      %26 = vector.load %arg8[%c0_23, %c0_24] : memref<32x1xf32, #tpu.memory_space<vmem>>, vector<32x1xf32>
      %c0_25 = arith.constant 0 : index
      %c0_26 = arith.constant 0 : index
      %c0_27 = arith.constant 0 : index
      %27 = vector.load %arg6[%c0_25, %c0_26, %c0_27] : memref<1x32x1xf32, #tpu.memory_space<vmem>>, vector<1x32x1xf32>
      %28 = vector.shape_cast %27 : vector<1x32x1xf32> to vector<32x1xf32>
      %29 = vector.shape_cast %26 : vector<32x1xf32> to vector<1x32x1xf32>
      tpu.vector_store %arg6[%c0_25, %c0_26, %c0_27], %29 {strides = array<i32>} : memref<1x32x1xf32, #tpu.memory_space<vmem>>, vector<1x32x1xf32>,
    } else {
    }
    return
  }
  func.func @transform_0(%arg0: i32, %arg1: i32) -> (i32, i32) {
    %c1_i32 = arith.constant 1 : i32
    %0 = arith.muli %arg0, %c1_i32 : i32
    %1 = arith.addi %0, %arg1 : i32
    %c0_i32 = arith.constant 0 : i32
    %c0_i32_0 = arith.constant 0 : i32
    return %c0_i32, %1 : i32, i32
  }
  func.func @transform_1(%arg0: i32, %arg1: i32) -> (i32, i32) {
    %c0_i32 = arith.constant 0 : i32
    %c0_i32_0 = arith.constant 0 : i32
    %c0_i32_1 = arith.constant 0 : i32
    return %c0_i32, %c0_i32_0 : i32, i32
  }
  func.func @transform_2(%arg0: i32, %arg1: i32) -> (i32, i32) {
    %c1_i32 = arith.constant 1 : i32
    %0 = arith.muli %arg0, %c1_i32 : i32
    %1 = arith.addi %0, %arg1 : i32
    %c0_i32 = arith.constant 0 : i32
    %c0_i32_0 = arith.constant 0 : i32
    return %c0_i32, %1 : i32, i32
  }
  func.func @transform_3(%arg0: i32, %arg1: i32) -> (i32, i32, i32) {
    %c0_i32 = arith.constant 0 : i32
    %c0_i32_0 = arith.constant 0 : i32
    %c0_i32_1 = arith.constant 0 : i32
    return %arg0, %c0_i32, %c0_i32_0 : i32, i32, i32
  }
  func.func @transform_4(%arg0: i32, %arg1: i32) -> (i32, i32, i32) {
    %c0_i32 = arith.constant 0 : i32
    %c0_i32_0 = arith.constant 0 : i32
    %c0_i32_1 = arith.constant 0 : i32
    return %arg0, %c0_i32, %c0_i32_0 : i32, i32, i32
  }
}

</mosaic_0001>

<llo_original>
// kernel: squeeze.130
$region0: #{squeeze.130}
  %s0 = inlined_call_operand.vmem [shape: f32[32], index: 0, kind: input, shape index: {}]
  %s1 = inlined_call_operand.vmem [shape: f32[8,4], index: 1, kind: output, shape index: {}]
  $region1: #{squeeze.130} parent=0
    #allocation0 [shape = 'u8[4096]{0}', space=vmem, size = 0x1000, scoped, tag = 'scoped mem for input reshape']
    %s3 = ssub.s32 2, 1
    %v4 = vld [vmem:[%s0] sm:%s3]
    %5 = vst [vmem:[#allocation0] sm:%s3] %v4
    %v6 = vld [vmem:[#allocation0] sm:$0x1]
    %vm7 = vcmask 31744
    %8 = vst.msk [vmem:[%s1] sm:$0x1] %vm7, %v6
    %v9 = vld [vmem:[#allocation0] sm:$0x1]
    %10 = vrot.lane.b32.xlu0 %v9, 124
    %v11 = vpop.permute.xlu0 %10
    %vm12 = vcmask 31744
    %s13 = scalar_lea.vmem %s1, 1
    %14 = vst.msk [vmem:[%s13] sm:$0x1] %vm12, %v11
    %v15 = vld [vmem:[#allocation0] sm:$0x1]
    %16 = vrot.lane.b32.xlu0 %v15, 120
    %v17 = vpop.permute.xlu0 %16
    %vm18 = vcmask 31744
    %s19 = scalar_lea.vmem %s1, 2
    %20 = vst.msk [vmem:[%s19] sm:$0x1] %vm18, %v17
    %v21 = vld [vmem:[#allocation0] sm:$0x1]
    %22 = vrot.lane.b32.xlu0 %v21, 116
    %v23 = vpop.permute.xlu0 %22
    %vm24 = vcmask 31744
    %s25 = scalar_lea.vmem %s1, 3
    %26 = vst.msk [vmem:[%s25] sm:$0x1] %vm24, %v23
    %v27 = vld [vmem:[#allocation0] sm:$0x1]
    %28 = vrot.lane.b32.xlu0 %v27, 112
    %v29 = vpop.permute.xlu0 %28
    %vm30 = vcmask 31744
    %s31 = scalar_lea.vmem %s1, 4
    %32 = vst.msk [vmem:[%s31] sm:$0x1] %vm30, %v29
    %v33 = vld [vmem:[#allocation0] sm:$0x1]
    %34 = vrot.lane.b32.xlu0 %v33, 108
    %v35 = vpop.permute.xlu0 %34
    %vm36 = vcmask 31744
    %s37 = scalar_lea.vmem %s1, 5
    %38 = vst.msk [vmem:[%s37] sm:$0x1] %vm36, %v35
    %v39 = vld [vmem:[#allocation0] sm:$0x1]
    %40 = vrot.lane.b32.xlu0 %v39, 104
    %v41 = vpop.permute.xlu0 %40
    %vm42 = vcmask 31744
    %s43 = scalar_lea.vmem %s1, 6
    %44 = vst.msk [vmem:[%s43] sm:$0x1] %vm42, %v41
    %v45 = vld [vmem:[#allocation0] sm:$0x1]
    %46 = vrot.lane.b32.xlu0 %v45, 100
    %v47 = vpop.permute.xlu0 %46
    %vm48 = vcmask 31744
    %s49 = scalar_lea.vmem %s1, 7
    %50 = vst.msk [vmem:[%s49] sm:$0x1] %vm48, %v47

// kernel: tile.13
$region0: #{tile.13}
  #allocation0 [shape = 's32[1]{0}', space=sflag, size = 0x4, scoped, tag = 'scoped memory for tile.13']
  %s0 = inlined_call_operand.vmem [shape: f32[4], index: 0, kind: input, shape index: {}]
  %s1 = inlined_call_operand.vmem [shape: f32[8,4], index: 1, kind: output, shape index: {}]
  // Predicated region
  $region2: #{tile.13} parent=0 // pred_check
    _
  $region3: #{tile.13} parent=0 // pred_check_branch
    %3 = sbr.rel (0) target = $region5
  $region4: #{tile.13} parent=0 // pred_region
    _
  $region5: #{tile.13} parent=0 // pred_fallthru
    _
  %v4 = vld [vmem:[%s0] ss:$0 sm:$0xff]
  %5 = vst [vmem:[%s1] sm:$0xff] %v4

// kernel: tile.0
$region0: #{tile.0}
  %s0 = inlined_call_operand.vmem [shape: f32[8,4], index: 0, kind: input, shape index: {}]
  %s1 = inlined_call_operand.vmem [shape: f32[32,1], index: 1, kind: output, shape index: {}]
  %v2 = vld [vmem:[%s0] sm:$0xff]
  %vm3 = vcmask 7168
  %4 = vst.msk [vmem:[%s1] ss:$4 sm:$0xff] %vm3, %v2
  %v5 = vld [vmem:[%s0] sm:$0xff]
  %6 = vrot.lane.b32.xlu0 %v5, 127
  %v7 = vpop.permute.xlu0 %6
  %vm8 = vcmask 7168
  %s9 = scalar_lea.vmem %s1, 1
  %10 = vst.msk [vmem:[%s9] ss:$4 sm:$0xff] %vm8, %v7
  %v11 = vld [vmem:[%s0] sm:$0xff]
  %12 = vrot.lane.b32.xlu0 %v11, 126
  %v13 = vpop.permute.xlu0 %12
  %vm14 = vcmask 7168
  %s15 = scalar_lea.vmem %s1, 2
  %16 = vst.msk [vmem:[%s15] ss:$4 sm:$0xff] %vm14, %v13
  %v17 = vld [vmem:[%s0] sm:$0xff]
  %18 = vrot.lane.b32.xlu0 %v17, 125
  %v19 = vpop.permute.xlu0 %18
  %vm20 = vcmask 7168
  %s21 = scalar_lea.vmem %s1, 3
  %22 = vst.msk [vmem:[%s21] ss:$4 sm:$0xff] %vm20, %v19

// kernel: new_up_transition.3
$region0: #{new_up_transition.3}
  #allocation0 [shape = 'u32[]', space=smem, size = 0x4, offset = 0x4, fixed_abs, tag = 'smem constant byte address 0x4 - core index']
  #allocation1 [shape = 'u32[72,128]{1,0:T(1,128)}', space=vmem, size = 0x9000, scoped, tag = 'internal scratch']
  %s0 = inlined_call_operand.vmem [shape: bf16[32,1024], index: 0, kind: input, shape index: {}]
  %s1 = inlined_call_operand.vmem [shape: f32[32,1], index: 1, kind: input, shape index: {}]
  %s2 = inlined_call_operand.vmem [shape: f32[32,1], index: 2, kind: input, shape index: {}]
  %s3 = inlined_call_operand.vmem [shape: bf16[32,1024], index: 3, kind: output, shape index: {}]
  %s4 = sld [smem:[#allocation0]]
  $region87: #{new_up_transition.3} parent=0
    _
  %s6 = ssub.s32 1, %s4
  %s7 = scalar_select 0, %s6, %s4
  $region1: #{new_up_transition.3} parent=0
    #allocation2 [shape = 'u8[65536]{0}', space=vmem, size = 0x10000, scoped, tag = 'input window, operand 0']
    #allocation3 [shape = 'u8[65536]{0}', space=vmem, size = 0x10000, scoped, tag = 'output window, operand 0']
    loop: start=0, step=1, limit=4
    $region2: #{new_up_transition.3} parent=1 // loop_pre_header
      _
    $region3: #{new_up_transition.3} parent=1 // loop_header
      %s9 = sphi 0, %s13
      %p10 = scmp.ge.s32.totalorder %s9, 4
      %s19 = sphi 0, %s21
      %s22 = sphi 0, %s19
      %s23 = sphi 0, %s22
      %s39 = sphi 0, %s23
      %s43 = sphi 0, %s43
      %s45 = sphi 0, %s43
      %s46 = sphi 0, %s45
      %s60 = sphi 0, %s46
      %s64 = sphi 0, %s64
      %s66 = sphi 0, %s64
      %s67 = sphi 0, %s66
      %s81 = sphi 0, %s67
      %s87 = sphi 0, %s89
      %s90 = sphi 0, %s87
      %s91 = sphi 0, %s90
      %s107 = sphi 0, %s91
    $region4: #{new_up_transition.3} parent=1 // loop_header_branch
      %12 = sbr.rel (%p10) target = $region8
    $region5: #{new_up_transition.3} parent=1 // loop_body
      %s14 = ssub.s32 %s9, 1
      %s15 = ssub.s32 %s9, 2
      %s16 = sadd.s32 %s9, 1
      %s17 = ssub.s32 %s9, %s16
      %p18 = scmp.eq.s32.totalorder %s17, 0
      %s20 = sadd.s32 %s19, 1
      %s21 = scalar_select %p18, %s19, %s20
      %p24 = pneg %p18
      %p25 = scmp.eq.s32.totalorder %s9, 1
      %p26 = por %p24, %p25
      %p27 = scmp.ne.s32.totalorder %s19, %s22
      %p28 = scmp.eq.s32.totalorder %s9, 0
      %p29 = por %p27, %p28
      %p30 = scmp.ne.s32.totalorder %s19, %s22
      %p31 = scmp.eq.s32.totalorder %s14, 1
      %p32 = por %p30, %p31
      %p33 = scmp.ne.s32.totalorder %s22, %s23
      %p34 = scmp.eq.s32.totalorder %s14, 0
      %p35 = por %p33, %p34
      %p36 = scmp.ne.s32.totalorder %s22, %s23
      %p37 = scmp.eq.s32.totalorder %s15, 1
      %p38 = por %p36, %p37
      %p40 = scmp.ne.s32.totalorder %s23, %s39
      %p41 = scmp.eq.s32.totalorder %s15, 0
      %p42 = por %p40, %p41
      %s44 = sadd.s32 %s43, 1
      %p47 = scmp.eq.s32.totalorder %s9, 1
      %p48 = scmp.ne.s32.totalorder %s43, %s45
      %p49 = scmp.eq.s32.totalorder %s9, 0
      %p50 = por %p48, %p49
      %p51 = scmp.ne.s32.totalorder %s43, %s45
      %p52 = scmp.eq.s32.totalorder %s14, 1
      %p53 = por %p51, %p52
      %p54 = scmp.ne.s32.totalorder %s45, %s46
      %p55 = scmp.eq.s32.totalorder %s14, 0
      %p56 = por %p54, %p55
      %p57 = scmp.ne.s32.totalorder %s45, %s46
      %p58 = scmp.eq.s32.totalorder %s15, 1
      %p59 = por %p57, %p58
      %p61 = scmp.ne.s32.totalorder %s46, %s60
      %p62 = scmp.eq.s32.totalorder %s15, 0
      %p63 = por %p61, %p62
      %s65 = sadd.s32 %s64, 1
      %p68 = scmp.eq.s32.totalorder %s9, 1
      %p69 = scmp.ne.s32.totalorder %s64, %s66
      %p70 = scmp.eq.s32.totalorder %s9, 0
      %p71 = por %p69, %p70
      %p72 = scmp.ne.s32.totalorder %s64, %s66
      %p73 = scmp.eq.s32.totalorder %s14, 1
      %p74 = por %p72, %p73
      %p75 = scmp.ne.s32.totalorder %s66, %s67
      %p76 = scmp.eq.s32.totalorder %s14, 0
      %p77 = por %p75, %p76
      %p78 = scmp.ne.s32.totalorder %s66, %s67
      %p79 = scmp.eq.s32.totalorder %s15, 1
      %p80 = por %p78, %p79
      %p82 = scmp.ne.s32.totalorder %s67, %s81
      %p83 = scmp.eq.s32.totalorder %s15, 0
      %p84 = por %p82, %p83
      %s85 = ssub.s32 %s9, %s16
      %p86 = scmp.eq.s32.totalorder %s85, 0
      %s88 = sadd.s32 %s87, 1
      %s89 = scalar_select %p86, %s87, %s88
      %p92 = pneg %p86
      %p93 = scmp.eq.s32.totalorder %s9, 1
      %p94 = por %p92, %p93
      %p95 = scmp.ne.s32.totalorder %s87, %s90
      %p96 = scmp.eq.s32.totalorder %s9, 0
      %p97 = por %p95, %p96
      %p98 = scmp.ne.s32.totalorder %s87, %s90
      %p99 = scmp.eq.s32.totalorder %s14, 1
      %p100 = por %p98, %p99
      %p101 = scmp.ne.s32.totalorder %s90, %s91
      %p102 = scmp.eq.s32.totalorder %s14, 0
      %p103 = por %p101, %p102
      %p104 = scmp.ne.s32.totalorder %s90, %s91
      %p105 = scmp.eq.s32.totalorder %s15, 1
      %p106 = por %p104, %p105
      %p108 = scmp.ne.s32.totalorder %s91, %s107
      %p109 = scmp.eq.s32.totalorder %s15, 0
      %p110 = por %p108, %p109
      %p111 = scmp.le.s32.totalorder 1, %s9
      %p112 = scmp.lt.s32.totalorder %s9, 3
      %p113 = pnand %p111, %p112
      %p114 = pneg %p113
      // Predicated region
      $region9: #{new_up_transition.3} parent=5 // pred_check
        _
      $region10: #{new_up_transition.3} parent=5 // pred_check_branch
        %116 = sbr.rel (%p113) target = $region12
      $region11: #{new_up_transition.3} parent=5 // pred_region
        %s117 = ssub.s32 %s9, 1
        // Predicated region
        $region13: #{new_up_transition.3} parent=11 // pred_check
          %p118 = pneg %p56
        $region14: #{new_up_transition.3} parent=11 // pred_check_branch
          %120 = sbr.rel (%p118) target = $region16
        $region15: #{new_up_transition.3} parent=11 // pred_region
          _
        $region16: #{new_up_transition.3} parent=11 // pred_fallthru
          _
        // Predicated region
        $region17: #{new_up_transition.3} parent=11 // pred_check
          %p121 = pneg %p77
        $region18: #{new_up_transition.3} parent=11 // pred_check_branch
          %123 = sbr.rel (%p121) target = $region20
        $region19: #{new_up_transition.3} parent=11 // pred_region
          _
        $region20: #{new_up_transition.3} parent=11 // pred_fallthru
          _
      $region12: #{new_up_transition.3} parent=5 // pred_fallthru
        _
      %p124 = scmp.lt.s32.totalorder %s9, 2
      // Predicated region
      $region21: #{new_up_transition.3} parent=5 // pred_check
        %p125 = pneg %p124
      $region22: #{new_up_transition.3} parent=5 // pred_check_branch
        %127 = sbr.rel (%p125) target = $region24
      $region23: #{new_up_transition.3} parent=5 // pred_region
        // Predicated region
        $region25: #{new_up_transition.3} parent=23 // pred_check
          %p128 = pneg %p29
        $region26: #{new_up_transition.3} parent=23 // pred_check_branch
          %130 = sbr.rel (%p128) target = $region28
        $region27: #{new_up_transition.3} parent=23 // pred_region
          %s131 = sand.u32 %s19, 1
          %s132 = sand.u32 %s19, 1
          %s133 = smul.addr %s132, 64
          %s134 = scalar_lea.vmem [#allocation2], %s133
          %s135 = smul.u32 4, %s9
          %s136 = smul.addr %s135, 4
          %s137 = scalar_lea.vmem %s0, %s136
          // Predicated region
          $region29: #{new_up_transition.3} parent=27 // pred_check
            _
          $region30: #{new_up_transition.3} parent=27 // pred_check_branch
            %139 = sbr.rel (0) target = $region32
          $region31: #{new_up_transition.3} parent=27 // pred_region
            // Predicated region
            $region33: #{new_up_transition.3} parent=31 // pred_check
              _
            $region34: #{new_up_transition.3} parent=31 // pred_check_branch
              %141 = sbr.rel (0) target = $region36
            $region35: #{new_up_transition.3} parent=31 // pred_region
              loop: start=0, step=1, limit=1
              $region37: #{new_up_transition.3} parent=35 // loop_pre_header
                _
              $region38: #{new_up_transition.3} parent=35 // loop_header
                %s143 = sphi 0, %s147
                %p144 = scmp.ge.s32.totalorder %s143, 1
                %s148 = sphi %s137, %s137
                %s149 = sphi %s134, %s134
              $region39: #{new_up_transition.3} parent=35 // loop_header_branch
                %146 = sbr.rel (%p144) target = $region43
              $region40: #{new_up_transition.3} parent=35 // loop_body
                %v150 = vld [vmem:[%s148] sm:$0xff]
                %151 = vst [vmem:[%s149] sm:$0xff] %v150
                %v152 = vld [vmem:[%s148 + $0x8] sm:$0xff]
                %153 = vst [vmem:[%s149 + $0x8] sm:$0xff] %v152
                %v154 = vld [vmem:[%s148 + $0x20] sm:$0xff]
                %155 = vst [vmem:[%s149 + $0x10] sm:$0xff] %v154
                %v156 = vld [vmem:[%s148 + $0x28] sm:$0xff]
                %157 = vst [vmem:[%s149 + $0x18] sm:$0xff] %v156
                %v158 = vld [vmem:[%s148 + $0x40] sm:$0xff]
                %159 = vst [vmem:[%s149 + $0x20] sm:$0xff] %v158
                %v160 = vld [vmem:[%s148 + $0x48] sm:$0xff]
                %161 = vst [vmem:[%s149 + $0x28] sm:$0xff] %v160
                %v162 = vld [vmem:[%s148 + $0x60] sm:$0xff]
                %163 = vst [vmem:[%s149 + $0x30] sm:$0xff] %v162
                %v164 = vld [vmem:[%s148 + $0x68] sm:$0xff]
                %165 = vst [vmem:[%s149 + $0x38] sm:$0xff] %v164
              $region41: #{new_up_transition.3} parent=35 // loop_footer
                %s147 = sadd.s32 1, %s143
              $region42: #{new_up_transition.3} parent=35 // loop_footer_branch
                %142 = sbr.rel target = $region38
              $region43: #{new_up_transition.3} parent=35 // loop_exit
                _
            $region36: #{new_up_transition.3} parent=31 // pred_fallthru
              _
            // Predicated region
            $region44: #{new_up_transition.3} parent=31 // pred_check
              _
            $region45: #{new_up_transition.3} parent=31 // pred_check_branch
              %167 = sbr.rel target = $region47
            $region46: #{new_up_transition.3} parent=31 // pred_region
              _
            $region47: #{new_up_transition.3} parent=31 // pred_fallthru
              _
          $region32: #{new_up_transition.3} parent=27 // pred_fallthru
            _
          %168 = vnop
        $region28: #{new_up_transition.3} parent=23 // pred_fallthru
          _
      $region24: #{new_up_transition.3} parent=5 // pred_fallthru
        _
      %p169 = scmp.le.s32.totalorder 1, %s9
      %p170 = scmp.lt.s32.totalorder %s9, 3
      %p171 = pnand %p169, %p170
      %p172 = pneg %p171
      // Predicated region
      $region48: #{new_up_transition.3} parent=5 // pred_check
        _
      $region49: #{new_up_transition.3} parent=5 // pred_check_branch
        %174 = sbr.rel (%p171) target = $region51
      $region50: #{new_up_transition.3} parent=5 // pred_region
        %s175 = ssub.s32 %s9, 1
        %s176 = sand.u32 %s22, 1
        %s177 = sand.u32 %s22, 1
        %s178 = smul.addr %s177, 64
        %s179 = scalar_lea.vmem [#allocation2], %s178
        // Predicated region
        $region52: #{new_up_transition.3} parent=50 // pred_check
          %p180 = pneg %p35
        $region53: #{new_up_transition.3} parent=50 // pred_check_branch
          %182 = sbr.rel (%p180) target = $region55
        $region54: #{new_up_transition.3} parent=50 // pred_region
          _
        $region55: #{new_up_transition.3} parent=50 // pred_fallthru
          _
        %s183 = sand.u32 %s22, 1
        %s184 = sand.u32 %s22, 1
        %s185 = smul.addr %s184, 64
        %s186 = scalar_lea.vmem [#allocation2], %s185
        %p187 = pneg %p35
        %p188 = pneg %p32
        %p189 = pneg %p56
        %p190 = pneg %p53
        %p191 = pneg %p77
        %p192 = pneg %p74
        %p193 = pneg %p103
        %p194 = pneg %p100
        %s195 = sand.u32 %s90, 1
        %s196 = sand.u32 %s90, 1
        %s197 = smul.addr %s196, 64
        %s198 = scalar_lea.vmem [#allocation3], %s197
        %s199 = smul.u32 4, %s14
        %s200 = smul.u32 4, %s14
        %v201 = vld [vmem:[%s179] sm:$0xff]
        %v202 = vld [vmem:[%s179 + $0x8] sm:$0xff]
        %v203 = vld [vmem:[%s179 + $0x10] sm:$0xff]
        %v204 = vld [vmem:[%s179 + $0x18] sm:$0xff]
        %v205 = vld [vmem:[%s179 + $0x20] sm:$0xff]
        %v206 = vld [vmem:[%s179 + $0x28] sm:$0xff]
        %v207 = vld [vmem:[%s179 + $0x30] sm:$0xff]
        %v208 = vld [vmem:[%s179 + $0x38] sm:$0xff]
        %v209 = vunpack.c.l.bf16 %v201
        %v210 = vunpack.c.h.bf16 %v201
        %v211 = vunpack.c.l.bf16 %v202
        %v212 = vunpack.c.h.bf16 %v202
        %v213 = vunpack.c.l.bf16 %v203
        %v214 = vunpack.c.h.bf16 %v203
        %v215 = vunpack.c.l.bf16 %v204
        %v216 = vunpack.c.h.bf16 %v204
        %v217 = vunpack.c.l.bf16 %v205
        %v218 = vunpack.c.h.bf16 %v205
        %v219 = vunpack.c.l.bf16 %v206
        %v220 = vunpack.c.h.bf16 %v206
        %v221 = vunpack.c.l.bf16 %v207
        %v222 = vunpack.c.h.bf16 %v207
        %v223 = vunpack.c.l.bf16 %v208
        %v224 = vunpack.c.h.bf16 %v208
        %v225 = vld [vmem:[%s1] sm:$0xff]
        %v226 = vld [vmem:[%s1 + $0x8] sm:$0xff]
        %v227 = vld [vmem:[%s1 + $0x10] sm:$0xff]
        %v228 = vld [vmem:[%s1 + $0x18] sm:$0xff]
        %230 = vset.pattern.permute.xlu0 0
        %231 = vperm.xlu0 %230, %v225
        %v232 = vpop.permute.xlu0 %231
        %235 = vset.pattern.permute.xlu0 0
        %236 = vperm.xlu0 %235, %v226
        %v237 = vpop.permute.xlu0 %236
        %240 = vset.pattern.permute.xlu0 0
        %241 = vperm.xlu0 %240, %v227
        %v242 = vpop.permute.xlu0 %241
        %245 = vset.pattern.permute.xlu0 0
        %246 = vperm.xlu0 %245, %v228
        %v247 = vpop.permute.xlu0 %246
        %v249 = vmul.f32 %v209, %v232
        %v250 = vmul.f32 %v210, %v232
        %v251 = vmul.f32 %v211, %v232
        %v252 = vmul.f32 %v212, %v232
        %v253 = vmul.f32 %v213, %v237
        %v254 = vmul.f32 %v214, %v237
        %v255 = vmul.f32 %v215, %v237
        %v256 = vmul.f32 %v216, %v237
        %v257 = vmul.f32 %v217, %v242
        %v258 = vmul.f32 %v218, %v242
        %v259 = vmul.f32 %v219, %v242
        %v260 = vmul.f32 %v220, %v242
        %v261 = vmul.f32 %v221, %v247
        %v262 = vmul.f32 %v222, %v247
        %v263 = vmul.f32 %v223, %v247
        %v264 = vmul.f32 %v224, %v247
        %v265 = vld [vmem:[%s2] sm:$0xff]
        %v266 = vld [vmem:[%s2 + $0x8] sm:$0xff]
        %v267 = vld [vmem:[%s2 + $0x10] sm:$0xff]
        %v268 = vld [vmem:[%s2 + $0x18] sm:$0xff]
        %270 = vset.pattern.permute.xlu0 0
        %271 = vperm.xlu0 %270, %v265
        %v272 = vpop.permute.xlu0 %271
        %275 = vset.pattern.permute.xlu0 0
        %276 = vperm.xlu0 %275, %v266
        %v277 = vpop.permute.xlu0 %276
        %280 = vset.pattern.permute.xlu0 0
        %281 = vperm.xlu0 %280, %v267
        %v282 = vpop.permute.xlu0 %281
        %285 = vset.pattern.permute.xlu0 0
        %286 = vperm.xlu0 %285, %v268
        %v287 = vpop.permute.xlu0 %286
        %v289 = vadd.f32 %v249, %v272
        %v290 = vadd.f32 %v250, %v272
        %v291 = vadd.f32 %v251, %v272
        %v292 = vadd.f32 %v252, %v272
        %v293 = vadd.f32 %v253, %v277
        %v294 = vadd.f32 %v254, %v277
        %v295 = vadd.f32 %v255, %v277
        %v296 = vadd.f32 %v256, %v277
        %v297 = vadd.f32 %v257, %v282
        %v298 = vadd.f32 %v258, %v282
        %v299 = vadd.f32 %v259, %v282
        %v300 = vadd.f32 %v260, %v282
        %v301 = vadd.f32 %v261, %v287
        %v302 = vadd.f32 %v262, %v287
        %v303 = vadd.f32 %v263, %v287
        %v304 = vadd.f32 %v264, %v287
        %v305 = vmax.f32 %v289, 0.0
        %v306 = vmax.f32 %v290, 0.0
        %v307 = vmax.f32 %v291, 0.0
        %v308 = vmax.f32 %v292, 0.0
        %v309 = vmax.f32 %v293, 0.0
        %v310 = vmax.f32 %v294, 0.0
        %v311 = vmax.f32 %v295, 0.0
        %v312 = vmax.f32 %v296, 0.0
        %v313 = vmax.f32 %v297, 0.0
        %v314 = vmax.f32 %v298, 0.0
        %v315 = vmax.f32 %v299, 0.0
        %v316 = vmax.f32 %v300, 0.0
        %v317 = vmax.f32 %v301, 0.0
        %v318 = vmax.f32 %v302, 0.0
        %v319 = vmax.f32 %v303, 0.0
        %v320 = vmax.f32 %v304, 0.0
        %v321 = vpack.c.bf16 %v306, %v305
        %v322 = vpack.c.bf16 %v308, %v307
        %v323 = vpack.c.bf16 %v310, %v309
        %v324 = vpack.c.bf16 %v312, %v311
        %v325 = vpack.c.bf16 %v314, %v313
        %v326 = vpack.c.bf16 %v316, %v315
        %v327 = vpack.c.bf16 %v318, %v317
        %v328 = vpack.c.bf16 %v320, %v319
        %329 = vst [vmem:[%s198] sm:$0xff] %v321
        %330 = vst [vmem:[%s198 + $0x8] sm:$0xff] %v322
        %331 = vst [vmem:[%s198 + $0x10] sm:$0xff] %v323
        %332 = vst [vmem:[%s198 + $0x18] sm:$0xff] %v324
        %333 = vst [vmem:[%s198 + $0x20] sm:$0xff] %v325
        %334 = vst [vmem:[%s198 + $0x28] sm:$0xff] %v326
        %335 = vst [vmem:[%s198 + $0x30] sm:$0xff] %v327
        %336 = vst [vmem:[%s198 + $0x38] sm:$0xff] %v328
        %s337 = sand.u32 %s90, 1
        %s338 = sand.u32 %s90, 1
        %s339 = smul.addr %s338, 64
        %s340 = scalar_lea.vmem [#allocation3], %s339
        // Predicated region
        $region56: #{new_up_transition.3} parent=50 // pred_check
          %p341 = pneg %p100
        $region57: #{new_up_transition.3} parent=50 // pred_check_branch
          %343 = sbr.rel (%p341) target = $region59
        $region58: #{new_up_transition.3} parent=50 // pred_region
          %s344 = smul.u32 4, %s14
          %s345 = smul.addr %s344, 4
          %s346 = scalar_lea.vmem %s3, %s345
          // Predicated region
          $region60: #{new_up_transition.3} parent=58 // pred_check
            _
          $region61: #{new_up_transition.3} parent=58 // pred_check_branch
            %348 = sbr.rel (0) target = $region63
          $region62: #{new_up_transition.3} parent=58 // pred_region
            // Predicated region
            $region64: #{new_up_transition.3} parent=62 // pred_check
              _
            $region65: #{new_up_transition.3} parent=62 // pred_check_branch
              %350 = sbr.rel (0) target = $region67
            $region66: #{new_up_transition.3} parent=62 // pred_region
              loop: start=0, step=1, limit=1
              $region68: #{new_up_transition.3} parent=66 // loop_pre_header
                _
              $region69: #{new_up_transition.3} parent=66 // loop_header
                %s352 = sphi 0, %s356
                %p353 = scmp.ge.s32.totalorder %s352, 1
                %s357 = sphi %s340, %s340
                %s358 = sphi %s346, %s346
              $region70: #{new_up_transition.3} parent=66 // loop_header_branch
                %355 = sbr.rel (%p353) target = $region74
              $region71: #{new_up_transition.3} parent=66 // loop_body
                %v359 = vld [vmem:[%s357] sm:$0xff]
                %360 = vst [vmem:[%s358] sm:$0xff] %v359
                %v361 = vld [vmem:[%s357 + $0x8] sm:$0xff]
                %362 = vst [vmem:[%s358 + $0x8] sm:$0xff] %v361
                %v363 = vld [vmem:[%s357 + $0x10] sm:$0xff]
                %364 = vst [vmem:[%s358 + $0x20] sm:$0xff] %v363
                %v365 = vld [vmem:[%s357 + $0x18] sm:$0xff]
                %366 = vst [vmem:[%s358 + $0x28] sm:$0xff] %v365
                %v367 = vld [vmem:[%s357 + $0x20] sm:$0xff]
                %368 = vst [vmem:[%s358 + $0x40] sm:$0xff] %v367
                %v369 = vld [vmem:[%s357 + $0x28] sm:$0xff]
                %370 = vst [vmem:[%s358 + $0x48] sm:$0xff] %v369
                %v371 = vld [vmem:[%s357 + $0x30] sm:$0xff]
                %372 = vst [vmem:[%s358 + $0x60] sm:$0xff] %v371
                %v373 = vld [vmem:[%s357 + $0x38] sm:$0xff]
                %374 = vst [vmem:[%s358 + $0x68] sm:$0xff] %v373
              $region72: #{new_up_transition.3} parent=66 // loop_footer
                %s356 = sadd.s32 1, %s352
              $region73: #{new_up_transition.3} parent=66 // loop_footer_branch
                %351 = sbr.rel target = $region69
              $region74: #{new_up_transition.3} parent=66 // loop_exit
                _
            $region67: #{new_up_transition.3} parent=62 // pred_fallthru
              _
            // Predicated region
            $region75: #{new_up_transition.3} parent=62 // pred_check
              _
            $region76: #{new_up_transition.3} parent=62 // pred_check_branch
              %376 = sbr.rel target = $region78
            $region77: #{new_up_transition.3} parent=62 // pred_region
              _
            $region78: #{new_up_transition.3} parent=62 // pred_fallthru
              _
          $region63: #{new_up_transition.3} parent=58 // pred_fallthru
            _
          %377 = vnop
        $region59: #{new_up_transition.3} parent=50 // pred_fallthru
          _
      $region51: #{new_up_transition.3} parent=5 // pred_fallthru
        _
      %p378 = scmp.le.s32.totalorder 2, %s9
      // Predicated region
      $region79: #{new_up_transition.3} parent=5 // pred_check
        %p379 = pneg %p378
      $region80: #{new_up_transition.3} parent=5 // pred_check_branch
        %381 = sbr.rel (%p379) target = $region82
      $region81: #{new_up_transition.3} parent=5 // pred_region
        %s382 = ssub.s32 %s9, 2
        // Predicated region
        $region83: #{new_up_transition.3} parent=81 // pred_check
          %p383 = pneg %p106
        $region84: #{new_up_transition.3} parent=81 // pred_check_branch
          %385 = sbr.rel (%p383) target = $region86
        $region85: #{new_up_transition.3} parent=81 // pred_region
          %s386 = sand.u32 %s91, 1
          %s387 = sand.u32 %s91, 1
          %s388 = smul.addr %s387, 64
          %s389 = scalar_lea.vmem [#allocation3], %s388
        $region86: #{new_up_transition.3} parent=81 // pred_fallthru
          _
      $region82: #{new_up_transition.3} parent=5 // pred_fallthru
        _
    $region6: #{new_up_transition.3} parent=1 // loop_footer
      %s13 = sadd.s32 1, %s9
    $region7: #{new_up_transition.3} parent=1 // loop_footer_branch
      %8 = sbr.rel target = $region3
    $region8: #{new_up_transition.3} parent=1 // loop_exit
      _

// kernel: new_up_transition.2
$region0: #{new_up_transition.2}
  #allocation0 [shape = 'u32[]', space=smem, size = 0x4, offset = 0x4, fixed_abs, tag = 'smem constant byte address 0x4 - core index']
  #allocation1 [shape = 'u32[72,128]{1,0:T(1,128)}', space=vmem, size = 0x9000, scoped, tag = 'internal scratch']
  #allocation2 [shape = 'f32[32,1]{1,0:T(8,128)}', space=vmem, size = 0x4000, scoped, tag = 'scratch operand']
  #allocation3 [shape = 'f32[32,1]{1,0:T(8,128)}', space=vmem, size = 0x4000, scoped, tag = 'scratch operand']
  %s0 = inlined_call_operand.vmem [shape: bf16[112,1024], index: 0, kind: input, shape index: {}]
  %s1 = inlined_call_operand.vmem [shape: bf16[32,112], index: 1, kind: input, shape index: {}]
  %s2 = inlined_call_operand.vmem [shape: bf16[32,1024], index: 2, kind: output, shape index: {0}]
  %s3 = inlined_call_operand.vmem [shape: f32[2,32,1], index: 3, kind: output, shape index: {1}]
  %s4 = inlined_call_operand.vmem [shape: f32[2,32,1], index: 4, kind: output, shape index: {2}]
  %5 = xla_tuple %s2, %s3, %s4
  %s6 = sld [smem:[#allocation0]]
  $region107: #{new_up_transition.2} parent=0
    _
  %s8 = ssub.s32 1, %s6
  %s9 = scalar_select 0, %s8, %s6
  $region1: #{new_up_transition.2} parent=0
    #allocation4 [shape = 'u8[229376]{0}', space=vmem, size = 0x38000, scoped, tag = 'input window, operand 0']
    #allocation5 [shape = 'u8[65536]{0}', space=vmem, size = 0x10000, scoped, tag = 'output window, operand 0']
    loop: start=0, step=1, limit=4
    $region2: #{new_up_transition.2} parent=1 // loop_pre_header
      _
    $region3: #{new_up_transition.2} parent=1 // loop_header
      %s11 = sphi 0, %s15
      %p12 = scmp.ge.s32.totalorder %s11, 4
      %s18 = sphi 0, %s30
      %s19 = sphi 0, %s26
      %s20 = sphi 0, %s18
      %s21 = sphi 0, %s19
      %s22 = sphi 0, %s20
      %s23 = sphi 0, %s21
      %s35 = sphi 0, %s37
      %s38 = sphi 0, %s35
      %s39 = sphi 0, %s38
      %s55 = sphi 0, %s39
      %s59 = sphi 0, %s59
      %s61 = sphi 0, %s59
      %s62 = sphi 0, %s61
      %s76 = sphi 0, %s62
      %s84 = sphi 0, %s86
      %s87 = sphi 0, %s84
      %s88 = sphi 0, %s87
      %s104 = sphi 0, %s88
      %s110 = sphi 0, %s112
      %s113 = sphi 0, %s110
      %s114 = sphi 0, %s113
      %s130 = sphi 0, %s114
      %s136 = sphi 0, %s138
      %s139 = sphi 0, %s136
      %s140 = sphi 0, %s139
      %s156 = sphi 0, %s140
    $region4: #{new_up_transition.2} parent=1 // loop_header_branch
      %14 = sbr.rel (%p12) target = $region8
    $region5: #{new_up_transition.2} parent=1 // loop_body
      %s16 = ssub.s32 %s11, 1
      %s17 = ssub.s32 %s11, 2
      %s24 = sadd.s32 1, %s19
      %p25 = scmp.ge.s32.totalorder %s24, 1
      %s26 = scalar_select %p25, 0, %s24
      %s27 = sadd.s32 1, %s18
      %s28 = scalar_select %p25, %s27, %s18
      %p29 = scmp.ge.s32.totalorder %s28, 2
      %s30 = scalar_select %p29, 0, %s28
      %s31 = sadd.s32 %s18, %s19
      %s32 = sadd.s32 %s30, %s26
      %s33 = ssub.s32 %s31, %s32
      %p34 = scmp.eq.s32.totalorder %s33, 0
      %s36 = sadd.s32 %s35, 1
      %s37 = scalar_select %p34, %s35, %s36
      %p40 = pneg %p34
      %p41 = scmp.eq.s32.totalorder %s11, 1
      %p42 = por %p40, %p41
      %p43 = scmp.ne.s32.totalorder %s35, %s38
      %p44 = scmp.eq.s32.totalorder %s11, 0
      %p45 = por %p43, %p44
      %p46 = scmp.ne.s32.totalorder %s35, %s38
      %p47 = scmp.eq.s32.totalorder %s16, 1
      %p48 = por %p46, %p47
      %p49 = scmp.ne.s32.totalorder %s38, %s39
      %p50 = scmp.eq.s32.totalorder %s16, 0
      %p51 = por %p49, %p50
      %p52 = scmp.ne.s32.totalorder %s38, %s39
      %p53 = scmp.eq.s32.totalorder %s17, 1
      %p54 = por %p52, %p53
      %p56 = scmp.ne.s32.totalorder %s39, %s55
      %p57 = scmp.eq.s32.totalorder %s17, 0
      %p58 = por %p56, %p57
      %s60 = sadd.s32 %s59, 1
      %p63 = scmp.eq.s32.totalorder %s11, 1
      %p64 = scmp.ne.s32.totalorder %s59, %s61
      %p65 = scmp.eq.s32.totalorder %s11, 0
      %p66 = por %p64, %p65
      %p67 = scmp.ne.s32.totalorder %s59, %s61
      %p68 = scmp.eq.s32.totalorder %s16, 1
      %p69 = por %p67, %p68
      %p70 = scmp.ne.s32.totalorder %s61, %s62
      %p71 = scmp.eq.s32.totalorder %s16, 0
      %p72 = por %p70, %p71
      %p73 = scmp.ne.s32.totalorder %s61, %s62
      %p74 = scmp.eq.s32.totalorder %s17, 1
      %p75 = por %p73, %p74
      %p77 = scmp.ne.s32.totalorder %s62, %s76
      %p78 = scmp.eq.s32.totalorder %s17, 0
      %p79 = por %p77, %p78
      %s80 = sadd.s32 %s18, %s19
      %s81 = sadd.s32 %s30, %s26
      %s82 = ssub.s32 %s80, %s81
      %p83 = scmp.eq.s32.totalorder %s82, 0
      %s85 = sadd.s32 %s84, 1
      %s86 = scalar_select %p83, %s84, %s85
      %p89 = pneg %p83
      %p90 = scmp.eq.s32.totalorder %s11, 1
      %p91 = por %p89, %p90
      %p92 = scmp.ne.s32.totalorder %s84, %s87
      %p93 = scmp.eq.s32.totalorder %s11, 0
      %p94 = por %p92, %p93
      %p95 = scmp.ne.s32.totalorder %s84, %s87
      %p96 = scmp.eq.s32.totalorder %s16, 1
      %p97 = por %p95, %p96
      %p98 = scmp.ne.s32.totalorder %s87, %s88
      %p99 = scmp.eq.s32.totalorder %s16, 0
      %p100 = por %p98, %p99
      %p101 = scmp.ne.s32.totalorder %s87, %s88
      %p102 = scmp.eq.s32.totalorder %s17, 1
      %p103 = por %p101, %p102
      %p105 = scmp.ne.s32.totalorder %s88, %s104
      %p106 = scmp.eq.s32.totalorder %s17, 0
      %p107 = por %p105, %p106
      %s108 = ssub.s32 %s18, %s30
      %p109 = scmp.eq.s32.totalorder %s108, 0
      %s111 = sadd.s32 %s110, 1
      %s112 = scalar_select %p109, %s110, %s111
      %p115 = pneg %p109
      %p116 = scmp.eq.s32.totalorder %s11, 1
      %p117 = por %p115, %p116
      %p118 = scmp.ne.s32.totalorder %s110, %s113
      %p119 = scmp.eq.s32.totalorder %s11, 0
      %p120 = por %p118, %p119
      %p121 = scmp.ne.s32.totalorder %s110, %s113
      %p122 = scmp.eq.s32.totalorder %s16, 1
      %p123 = por %p121, %p122
      %p124 = scmp.ne.s32.totalorder %s113, %s114
      %p125 = scmp.eq.s32.totalorder %s16, 0
      %p126 = por %p124, %p125
      %p127 = scmp.ne.s32.totalorder %s113, %s114
      %p128 = scmp.eq.s32.totalorder %s17, 1
      %p129 = por %p127, %p128
      %p131 = scmp.ne.s32.totalorder %s114, %s130
      %p132 = scmp.eq.s32.totalorder %s17, 0
      %p133 = por %p131, %p132
      %s134 = ssub.s32 %s18, %s30
      %p135 = scmp.eq.s32.totalorder %s134, 0
      %s137 = sadd.s32 %s136, 1
      %s138 = scalar_select %p135, %s136, %s137
      %p141 = pneg %p135
      %p142 = scmp.eq.s32.totalorder %s11, 1
      %p143 = por %p141, %p142
      %p144 = scmp.ne.s32.totalorder %s136, %s139
      %p145 = scmp.eq.s32.totalorder %s11, 0
      %p146 = por %p144, %p145
      %p147 = scmp.ne.s32.totalorder %s136, %s139
      %p148 = scmp.eq.s32.totalorder %s16, 1
      %p149 = por %p147, %p148
      %p150 = scmp.ne.s32.totalorder %s139, %s140
      %p151 = scmp.eq.s32.totalorder %s16, 0
      %p152 = por %p150, %p151
      %p153 = scmp.ne.s32.totalorder %s139, %s140
      %p154 = scmp.eq.s32.totalorder %s17, 1
      %p155 = por %p153, %p154
      %p157 = scmp.ne.s32.totalorder %s140, %s156
      %p158 = scmp.eq.s32.totalorder %s17, 0
      %p159 = por %p157, %p158
      %p160 = scmp.le.s32.totalorder 1, %s11
      %p161 = scmp.lt.s32.totalorder %s11, 3
      %p162 = pnand %p160, %p161
      %p163 = pneg %p162
      // Predicated region
      $region9: #{new_up_transition.2} parent=5 // pred_check
        _
      $region10: #{new_up_transition.2} parent=5 // pred_check_branch
        %165 = sbr.rel (%p162) target = $region12
      $region11: #{new_up_transition.2} parent=5 // pred_region
        %s166 = ssub.s32 %s11, 1
        // Predicated region
        $region13: #{new_up_transition.2} parent=11 // pred_check
          %p167 = pneg %p72
        $region14: #{new_up_transition.2} parent=11 // pred_check_branch
          %169 = sbr.rel (%p167) target = $region16
        $region15: #{new_up_transition.2} parent=11 // pred_region
          _
        $region16: #{new_up_transition.2} parent=11 // pred_fallthru
          _
      $region12: #{new_up_transition.2} parent=5 // pred_fallthru
        _
      %p170 = scmp.lt.s32.totalorder %s11, 2
      // Predicated region
      $region17: #{new_up_transition.2} parent=5 // pred_check
        %p171 = pneg %p170
      $region18: #{new_up_transition.2} parent=5 // pred_check_branch
        %173 = sbr.rel (%p171) target = $region20
      $region19: #{new_up_transition.2} parent=5 // pred_region
        // Predicated region
        $region21: #{new_up_transition.2} parent=19 // pred_check
          %p174 = pneg %p45
        $region22: #{new_up_transition.2} parent=19 // pred_check_branch
          %176 = sbr.rel (%p174) target = $region24
        $region23: #{new_up_transition.2} parent=19 // pred_region
          %s177 = sand.u32 %s35, 1
          %s178 = sand.u32 %s35, 1
          %s179 = smul.addr %s178, 224
          %s180 = scalar_lea.vmem [#allocation4], %s179
          %s181 = sadd.s32 %s18, %s19
          %s182 = smul.u32 4, %s181
          %s183 = smul.addr %s182, 4
          %s184 = scalar_lea.vmem %s0, %s183
          // Predicated region
          $region25: #{new_up_transition.2} parent=23 // pred_check
            _
          $region26: #{new_up_transition.2} parent=23 // pred_check_branch
            %186 = sbr.rel (0) target = $region28
          $region27: #{new_up_transition.2} parent=23 // pred_region
            // Predicated region
            $region29: #{new_up_transition.2} parent=27 // pred_check
              _
            $region30: #{new_up_transition.2} parent=27 // pred_check_branch
              %188 = sbr.rel (0) target = $region32
            $region31: #{new_up_transition.2} parent=27 // pred_region
              loop: start=0, step=1, limit=1
              $region33: #{new_up_transition.2} parent=31 // loop_pre_header
                _
              $region34: #{new_up_transition.2} parent=31 // loop_header
                %s190 = sphi 0, %s194
                %p191 = scmp.ge.s32.totalorder %s190, 1
                %s195 = sphi %s184, %s184
                %s196 = sphi %s180, %s180
              $region35: #{new_up_transition.2} parent=31 // loop_header_branch
                %193 = sbr.rel (%p191) target = $region39
              $region36: #{new_up_transition.2} parent=31 // loop_body
                %v197 = vld [vmem:[%s195] sm:$0xff]
                %198 = vst [vmem:[%s196] sm:$0xff] %v197
                %v199 = vld [vmem:[%s195 + $0x8] sm:$0xff]
                %200 = vst [vmem:[%s196 + $0x8] sm:$0xff] %v199
                %v201 = vld [vmem:[%s195 + $0x20] sm:$0xff]
                %202 = vst [vmem:[%s196 + $0x10] sm:$0xff] %v201
                %v203 = vld [vmem:[%s195 + $0x28] sm:$0xff]
                %204 = vst [vmem:[%s196 + $0x18] sm:$0xff] %v203
                %v205 = vld [vmem:[%s195 + $0x40] sm:$0xff]
                %206 = vst [vmem:[%s196 + $0x20] sm:$0xff] %v205
                %v207 = vld [vmem:[%s195 + $0x48] sm:$0xff]
                %208 = vst [vmem:[%s196 + $0x28] sm:$0xff] %v207
                %v209 = vld [vmem:[%s195 + $0x60] sm:$0xff]
                %210 = vst [vmem:[%s196 + $0x30] sm:$0xff] %v209
                %v211 = vld [vmem:[%s195 + $0x68] sm:$0xff]
                %212 = vst [vmem:[%s196 + $0x38] sm:$0xff] %v211
                %v213 = vld [vmem:[%s195 + $0x80] sm:$0xff]
                %214 = vst [vmem:[%s196 + $0x40] sm:$0xff] %v213
                %v215 = vld [vmem:[%s195 + $0x88] sm:$0xff]
                %216 = vst [vmem:[%s196 + $0x48] sm:$0xff] %v215
                %v217 = vld [vmem:[%s195 + $0xa0] sm:$0xff]
                %218 = vst [vmem:[%s196 + $0x50] sm:$0xff] %v217
                %v219 = vld [vmem:[%s195 + $0xa8] sm:$0xff]
                %220 = vst [vmem:[%s196 + $0x58] sm:$0xff] %v219
                %v221 = vld [vmem:[%s195 + $0xc0] sm:$0xff]
                %222 = vst [vmem:[%s196 + $0x60] sm:$0xff] %v221
                %v223 = vld [vmem:[%s195 + $0xc8] sm:$0xff]
                %224 = vst [vmem:[%s196 + $0x68] sm:$0xff] %v223
                %v225 = vld [vmem:[%s195 + $0xe0] sm:$0xff]
                %226 = vst [vmem:[%s196 + $0x70] sm:$0xff] %v225
                %v227 = vld [vmem:[%s195 + $0xe8] sm:$0xff]
                %228 = vst [vmem:[%s196 + $0x78] sm:$0xff] %v227
                %v229 = vld [vmem:[%s195 + $0x100] sm:$0xff]
                %230 = vst [vmem:[%s196 + $0x80] sm:$0xff] %v229
                %v231 = vld [vmem:[%s195 + $0x108] sm:$0xff]
                %232 = vst [vmem:[%s196 + $0x88] sm:$0xff] %v231
                %v233 = vld [vmem:[%s195 + $0x120] sm:$0xff]
                %234 = vst [vmem:[%s196 + $0x90] sm:$0xff] %v233
                %v235 = vld [vmem:[%s195 + $0x128] sm:$0xff]
                %236 = vst [vmem:[%s196 + $0x98] sm:$0xff] %v235
                %v237 = vld [vmem:[%s195 + $0x140] sm:$0xff]
                %238 = vst [vmem:[%s196 + $0xa0] sm:$0xff] %v237
                %v239 = vld [vmem:[%s195 + $0x148] sm:$0xff]
                %240 = vst [vmem:[%s196 + $0xa8] sm:$0xff] %v239
                %v241 = vld [vmem:[%s195 + $0x160] sm:$0xff]
                %242 = vst [vmem:[%s196 + $0xb0] sm:$0xff] %v241
                %v243 = vld [vmem:[%s195 + $0x168] sm:$0xff]
                %244 = vst [vmem:[%s196 + $0xb8] sm:$0xff] %v243
                %v245 = vld [vmem:[%s195 + $0x180] sm:$0xff]
                %246 = vst [vmem:[%s196 + $0xc0] sm:$0xff] %v245
                %v247 = vld [vmem:[%s195 + $0x188] sm:$0xff]
                %248 = vst [vmem:[%s196 + $0xc8] sm:$0xff] %v247
                %v249 = vld [vmem:[%s195 + $0x1a0] sm:$0xff]
                %250 = vst [vmem:[%s196 + $0xd0] sm:$0xff] %v249
                %v251 = vld [vmem:[%s195 + $0x1a8] sm:$0xff]
                %252 = vst [vmem:[%s196 + $0xd8] sm:$0xff] %v251
              $region37: #{new_up_transition.2} parent=31 // loop_footer
                %s194 = sadd.s32 1, %s190
              $region38: #{new_up_transition.2} parent=31 // loop_footer_branch
                %189 = sbr.rel target = $region34
              $region39: #{new_up_transition.2} parent=31 // loop_exit
                _
            $region32: #{new_up_transition.2} parent=27 // pred_fallthru
              _
            // Predicated region
            $region40: #{new_up_transition.2} parent=27 // pred_check
              _
            $region41: #{new_up_transition.2} parent=27 // pred_check_branch
              %254 = sbr.rel target = $region43
            $region42: #{new_up_transition.2} parent=27 // pred_region
              _
            $region43: #{new_up_transition.2} parent=27 // pred_fallthru
              _
          $region28: #{new_up_transition.2} parent=23 // pred_fallthru
            _
          %255 = vnop
        $region24: #{new_up_transition.2} parent=19 // pred_fallthru
          _
      $region20: #{new_up_transition.2} parent=5 // pred_fallthru
        _
      %p256 = scmp.le.s32.totalorder 1, %s11
      %p257 = scmp.lt.s32.totalorder %s11, 3
      %p258 = pnand %p256, %p257
      %p259 = pneg %p258
      // Predicated region
      $region44: #{new_up_transition.2} parent=5 // pred_check
        _
      $region45: #{new_up_transition.2} parent=5 // pred_check_branch
        %261 = sbr.rel (%p258) target = $region47
      $region46: #{new_up_transition.2} parent=5 // pred_region
        %s262 = ssub.s32 %s11, 1
        %s263 = sand.u32 %s38, 1
        %s264 = sand.u32 %s38, 1
        %s265 = smul.addr %s264, 224
        %s266 = scalar_lea.vmem [#allocation4], %s265
        // Predicated region
        $region48: #{new_up_transition.2} parent=46 // pred_check
          %p267 = pneg %p51
        $region49: #{new_up_transition.2} parent=46 // pred_check_branch
          %269 = sbr.rel (%p267) target = $region51
        $region50: #{new_up_transition.2} parent=46 // pred_region
          _
        $region51: #{new_up_transition.2} parent=46 // pred_fallthru
          _
        %s270 = sand.u32 %s38, 1
        %s271 = sand.u32 %s38, 1
        %s272 = smul.addr %s271, 224
        %s273 = scalar_lea.vmem [#allocation4], %s272
        %p274 = pneg %p51
        %p275 = pneg %p48
        %p276 = pneg %p72
        %p277 = pneg %p69
        %p278 = pneg %p100
        %p279 = pneg %p97
        %s280 = sand.u32 %s87, 1
        %s281 = sand.u32 %s87, 1
        %s282 = smul.addr %s281, 64
        %s283 = scalar_lea.vmem [#allocation5], %s282
        %p284 = pneg %p126
        %p285 = pneg %p123
        %p286 = scmp.lt.s32.totalorder %s20, 1
        %s287 = scalar_select %p286, %s20, 1
        %s288 = smul.addr %s287, 4
        %s289 = smul.addr %s288, 8
        %s290 = scalar_lea.vmem %s3, %s289
        %p291 = pneg %p152
        %p292 = pneg %p149
        %p293 = scmp.lt.s32.totalorder %s20, 1
        %s294 = scalar_select %p293, %s20, 1
        %s295 = smul.addr %s294, 4
        %s296 = smul.addr %s295, 8
        %s297 = scalar_lea.vmem %s4, %s296
        %s298 = sadd.s32 %s20, %s21
        %s299 = smul.u32 4, %s298
        %s300 = sadd.s32 %s20, %s21
        %s301 = smul.u32 4, %s300
        %p302 = scmp.lt.s32.totalorder %s20, 1
        %s303 = scalar_select %p302, %s20, 1
        %s304 = smul.addr %s303, 4
        %s305 = smul.addr %s304, 8
        %s306 = scalar_lea.vmem %s3, %s305
        %p307 = scmp.lt.s32.totalorder %s20, 1
        %s308 = scalar_select %p307, %s20, 1
        %s309 = smul.addr %s308, 4
        %s310 = smul.addr %s309, 8
        %s311 = scalar_lea.vmem %s4, %s310
        %p313 = scmp.eq.s32.totalorder %s21, 0
        // Predicated region
        $region52: #{new_up_transition.2} parent=46 // pred_check
          %p314 = pneg %p313
        $region53: #{new_up_transition.2} parent=46 // pred_check_branch
          %316 = sbr.rel (%p314) target = $region55
        $region54: #{new_up_transition.2} parent=46 // pred_region
          %vm317 = vcmask 7168
          %318 = vst.msk [vmem:[#allocation2] sm:$0xff] %vm317, 0.0
          %319 = vst.msk [vmem:[#allocation2 + $0x8] sm:$0xff] %vm317, 0.0
          %320 = vst.msk [vmem:[#allocation2 + $0x10] sm:$0xff] %vm317, 0.0
          %321 = vst.msk [vmem:[#allocation2 + $0x18] sm:$0xff] %vm317, 0.0
          %322 = vst.msk [vmem:[#allocation3] sm:$0xff] %vm317, 0.0
          %323 = vst.msk [vmem:[#allocation3 + $0x8] sm:$0xff] %vm317, 0.0
          %324 = vst.msk [vmem:[#allocation3 + $0x10] sm:$0xff] %vm317, 0.0
          %325 = vst.msk [vmem:[#allocation3 + $0x18] sm:$0xff] %vm317, 0.0
        $region55: #{new_up_transition.2} parent=46 // pred_fallthru
          _
        %v326 = vld [vmem:[%s1] sm:$0xf]
        %v327 = vld [vmem:[%s1 + $0x4] sm:$0xf]
        %v328 = vld [vmem:[%s1 + $0x8] sm:$0xf]
        %v329 = vld [vmem:[%s1 + $0xc] sm:$0xf]
        %v330 = vld [vmem:[%s266] sm:$0xff]
        %v331 = vld [vmem:[%s266 + $0x8] sm:$0xff]
        %v332 = vld [vmem:[%s266 + $0x10] sm:$0xff]
        %v333 = vld [vmem:[%s266 + $0x18] sm:$0xff]
        %v334 = vld [vmem:[%s266 + $0x20] sm:$0xff]
        %v335 = vld [vmem:[%s266 + $0x28] sm:$0xff]
        %v336 = vld [vmem:[%s266 + $0x30] sm:$0xff]
        %v337 = vld [vmem:[%s266 + $0x38] sm:$0xff]
        %v338 = vld [vmem:[%s266 + $0x40] sm:$0xff]
        %v339 = vld [vmem:[%s266 + $0x48] sm:$0xff]
        %v340 = vld [vmem:[%s266 + $0x50] sm:$0xff]
        %v341 = vld [vmem:[%s266 + $0x58] sm:$0xff]
        %v342 = vld [vmem:[%s266 + $0x60] sm:$0xff]
        %v343 = vld [vmem:[%s266 + $0x68] sm:$0xff]
        %v344 = vld [vmem:[%s266 + $0x70] sm:$0xff]
        %v345 = vld [vmem:[%s266 + $0x78] sm:$0xff]
        %v346 = vld [vmem:[%s266 + $0x80] sm:$0xff]
        %v347 = vld [vmem:[%s266 + $0x88] sm:$0xff]
        %v348 = vld [vmem:[%s266 + $0x90] sm:$0xff]
        %v349 = vld [vmem:[%s266 + $0x98] sm:$0xff]
        %v350 = vld [vmem:[%s266 + $0xa0] sm:$0xff]
        %v351 = vld [vmem:[%s266 + $0xa8] sm:$0xff]
        %v352 = vld [vmem:[%s266 + $0xb0] sm:$0xff]
        %v353 = vld [vmem:[%s266 + $0xb8] sm:$0xff]
        %v354 = vld [vmem:[%s266 + $0xc0] sm:$0xff]
        %v355 = vld [vmem:[%s266 + $0xc8] sm:$0xff]
        %v356 = vld [vmem:[%s266 + $0xd0] sm:$0xff]
        %v357 = vld [vmem:[%s266 + $0xd8] sm:$0xff]
        %v362 = vunpack.c.l.b16 %v326
        %v363 = vunpack.c.l.b16 %v327
        %v364 = vunpack.c.l.b16 %v328
        %v365 = vunpack.c.l.b16 %v329
        %v366 = vpack.c.b16 %v363, %v362
        %v367 = vpack.c.b16 %v365, %v364
        %v396 = vunpack.c.l.b16 %v330
        %v397 = vunpack.c.h.b16 %v330
        %v398 = vunpack.c.l.b16 %v331
        %v399 = vunpack.c.h.b16 %v331
        %v400 = vunpack.c.l.b16 %v332
        %v401 = vunpack.c.h.b16 %v332
        %v402 = vunpack.c.l.b16 %v333
        %v403 = vunpack.c.h.b16 %v333
        %v404 = vunpack.c.l.b16 %v334
        %v405 = vunpack.c.h.b16 %v334
        %v406 = vunpack.c.l.b16 %v335
        %v407 = vunpack.c.h.b16 %v335
        %v408 = vunpack.c.l.b16 %v336
        %v409 = vunpack.c.h.b16 %v336
        %v410 = vunpack.c.l.b16 %v337
        %v411 = vunpack.c.h.b16 %v337
        %v412 = vunpack.c.l.b16 %v338
        %v413 = vunpack.c.h.b16 %v338
        %v414 = vunpack.c.l.b16 %v339
        %v415 = vunpack.c.h.b16 %v339
        %v416 = vunpack.c.l.b16 %v340
        %v417 = vunpack.c.h.b16 %v340
        %v418 = vunpack.c.l.b16 %v341
        %v419 = vunpack.c.h.b16 %v341
        %v420 = vunpack.c.l.b16 %v342
        %v421 = vunpack.c.h.b16 %v342
        %v422 = vunpack.c.l.b16 %v343
        %v423 = vunpack.c.h.b16 %v343
        %v424 = vunpack.c.l.b16 %v344
        %v425 = vunpack.c.h.b16 %v344
        %v426 = vunpack.c.l.b16 %v345
        %v427 = vunpack.c.h.b16 %v345
        %v428 = vunpack.c.l.b16 %v346
        %v429 = vunpack.c.h.b16 %v346
        %v430 = vunpack.c.l.b16 %v347
        %v431 = vunpack.c.h.b16 %v347
        %v432 = vunpack.c.l.b16 %v348
        %v433 = vunpack.c.h.b16 %v348
        %v434 = vunpack.c.l.b16 %v349
        %v435 = vunpack.c.h.b16 %v349
        %v436 = vunpack.c.l.b16 %v350
        %v437 = vunpack.c.h.b16 %v350
        %v438 = vunpack.c.l.b16 %v351
        %v439 = vunpack.c.h.b16 %v351
        %v440 = vunpack.c.l.b16 %v352
        %v441 = vunpack.c.h.b16 %v352
        %v442 = vunpack.c.l.b16 %v353
        %v443 = vunpack.c.h.b16 %v353
        %v444 = vunpack.c.l.b16 %v354
        %v445 = vunpack.c.h.b16 %v354
        %v446 = vunpack.c.l.b16 %v355
        %v447 = vunpack.c.h.b16 %v355
        %v448 = vunpack.c.l.b16 %v356
        %v449 = vunpack.c.h.b16 %v356
        %v450 = vunpack.c.l.b16 %v357
        %v451 = vunpack.c.h.b16 %v357
        %v452 = vpack.c.b16 %v400, %v396
        %v453 = vpack.c.b16 %v401, %v397
        %v454 = vpack.c.b16 %v402, %v398
        %v455 = vpack.c.b16 %v403, %v399
        %v456 = vpack.c.b16 %v408, %v404
        %v457 = vpack.c.b16 %v409, %v405
        %v458 = vpack.c.b16 %v410, %v406
        %v459 = vpack.c.b16 %v411, %v407
        %v460 = vpack.c.b16 %v416, %v412
        %v461 = vpack.c.b16 %v417, %v413
        %v462 = vpack.c.b16 %v418, %v414
        %v463 = vpack.c.b16 %v419, %v415
        %v464 = vpack.c.b16 %v424, %v420
        %v465 = vpack.c.b16 %v425, %v421
        %v466 = vpack.c.b16 %v426, %v422
        %v467 = vpack.c.b16 %v427, %v423
        %v468 = vpack.c.b16 %v432, %v428
        %v469 = vpack.c.b16 %v433, %v429
        %v470 = vpack.c.b16 %v434, %v430
        %v471 = vpack.c.b16 %v435, %v431
        %v472 = vpack.c.b16 %v440, %v436
        %v473 = vpack.c.b16 %v441, %v437
        %v474 = vpack.c.b16 %v442, %v438
        %v475 = vpack.c.b16 %v443, %v439
        %v476 = vpack.c.b16 %v448, %v444
        %v477 = vpack.c.b16 %v449, %v445
        %v478 = vpack.c.b16 %v450, %v446
        %v479 = vpack.c.b16 %v451, %v447
        %vm508 = vcmask 916480
        %v510 = vsel %vm508, %v366, 0
        %v513 = vsel %vm508, %v367, 0
        %515 = vmatpush.bf16.msra.mxu0 0
        %516 = vmatpush.bf16.msra.mxu0 %v476
        %517 = vmatpush.bf16.msra.mxu0 %v472
        %518 = vmatpush.bf16.msra.mxu0 %v468
        %519 = vmatpush.bf16.msra.mxu0 %v464
        %520 = vmatpush.bf16.msra.mxu0 %v460
        %521 = vmatpush.bf16.msra.mxu0 %v456
        %522 = vmatpush.bf16.msra.mxu0 %v452
        %523 = vmatmul.bf16.gmra.mxu0 %v510
        %v524 = vpop.f32.mrf.mxu0
        %v525 = vadd.f32 0.0, %v524
        %v526 = vpop.f32.mrf.mxu0
        %v527 = vadd.f32 0.0, %v526
        %528 = vmatmul.bf16.gmra.mxu0 %v513
        %v529 = vpop.f32.mrf.mxu0
        %v530 = vadd.f32 0.0, %v529
        %v531 = vpop.f32.mrf.mxu0
        %v532 = vadd.f32 0.0, %v531
        %533 = vdwg.mxu0
        %534 = vmatpush.bf16.msra.mxu0 0
        %535 = vmatpush.bf16.msra.mxu0 %v477
        %536 = vmatpush.bf16.msra.mxu0 %v473
        %537 = vmatpush.bf16.msra.mxu0 %v469
        %538 = vmatpush.bf16.msra.mxu0 %v465
        %539 = vmatpush.bf16.msra.mxu0 %v461
        %540 = vmatpush.bf16.msra.mxu0 %v457
        %541 = vmatpush.bf16.msra.mxu0 %v453
        %542 = vmatmul.bf16.gmra.mxu0 %v510
        %v543 = vpop.f32.mrf.mxu0
        %v544 = vadd.f32 0.0, %v543
        %v545 = vpop.f32.mrf.mxu0
        %v546 = vadd.f32 0.0, %v545
        %547 = vmatmul.bf16.gmra.mxu0 %v513
        %v548 = vpop.f32.mrf.mxu0
        %v549 = vadd.f32 0.0, %v548
        %v550 = vpop.f32.mrf.mxu0
        %v551 = vadd.f32 0.0, %v550
        %552 = vdwg.mxu0
        %553 = vmatpush.bf16.msra.mxu0 0
        %554 = vmatpush.bf16.msra.mxu0 %v478
        %555 = vmatpush.bf16.msra.mxu0 %v474
        %556 = vmatpush.bf16.msra.mxu0 %v470
        %557 = vmatpush.bf16.msra.mxu0 %v466
        %558 = vmatpush.bf16.msra.mxu0 %v462
        %559 = vmatpush.bf16.msra.mxu0 %v458
        %560 = vmatpush.bf16.msra.mxu0 %v454
        %561 = vmatmul.bf16.gmra.mxu0 %v510
        %v562 = vpop.f32.mrf.mxu0
        %v563 = vadd.f32 0.0, %v562
        %v564 = vpop.f32.mrf.mxu0
        %v565 = vadd.f32 0.0, %v564
        %566 = vmatmul.bf16.gmra.mxu0 %v513
        %v567 = vpop.f32.mrf.mxu0
        %v568 = vadd.f32 0.0, %v567
        %v569 = vpop.f32.mrf.mxu0
        %v570 = vadd.f32 0.0, %v569
        %571 = vdwg.mxu0
        %572 = vmatpush.bf16.msra.mxu0 0
        %573 = vmatpush.bf16.msra.mxu0 %v479
        %574 = vmatpush.bf16.msra.mxu0 %v475
        %575 = vmatpush.bf16.msra.mxu0 %v471
        %576 = vmatpush.bf16.msra.mxu0 %v467
        %577 = vmatpush.bf16.msra.mxu0 %v463
        %578 = vmatpush.bf16.msra.mxu0 %v459
        %579 = vmatpush.bf16.msra.mxu0 %v455
        %580 = vmatmul.bf16.gmra.mxu0 %v510
        %v581 = vpop.f32.mrf.mxu0
        %v582 = vadd.f32 0.0, %v581
        %v583 = vpop.f32.mrf.mxu0
        %v584 = vadd.f32 0.0, %v583
        %585 = vmatmul.bf16.gmra.mxu0 %v513
        %v586 = vpop.f32.mrf.mxu0
        %v587 = vadd.f32 0.0, %v586
        %v588 = vpop.f32.mrf.mxu0
        %v589 = vadd.f32 0.0, %v588
        %590 = vdwg.mxu0
        %v591 = vpack.c.bf16 %v544, %v525
        %v592 = vpack.c.bf16 %v582, %v563
        %v593 = vpack.c.bf16 %v546, %v527
        %v594 = vpack.c.bf16 %v584, %v565
        %v595 = vpack.c.bf16 %v549, %v530
        %v596 = vpack.c.bf16 %v587, %v568
        %v597 = vpack.c.bf16 %v551, %v532
        %v598 = vpack.c.bf16 %v589, %v570
        %599 = vst [vmem:[%s283] sm:$0xff] %v591
        %600 = vst [vmem:[%s283 + $0x8] sm:$0xff] %v592
        %601 = vst [vmem:[%s283 + $0x10] sm:$0xff] %v593
        %602 = vst [vmem:[%s283 + $0x18] sm:$0xff] %v594
        %603 = vst [vmem:[%s283 + $0x20] sm:$0xff] %v595
        %604 = vst [vmem:[%s283 + $0x28] sm:$0xff] %v596
        %605 = vst [vmem:[%s283 + $0x30] sm:$0xff] %v597
        %606 = vst [vmem:[%s283 + $0x38] sm:$0xff] %v598
        %v607 = vld [vmem:[#allocation2] sm:$0xff]
        %v608 = vld [vmem:[#allocation2 + $0x8] sm:$0xff]
        %v609 = vld [vmem:[#allocation2 + $0x10] sm:$0xff]
        %v610 = vld [vmem:[#allocation2 + $0x18] sm:$0xff]
        %v611 = vadd.f32 %v525, %v544
        %v612 = vadd.f32 %v611, %v563
        %v613 = vadd.f32 %v612, %v582
        %614 = vadd.xlane.f32.xlu0 %v613
        %v615 = vpop.xlane.xlu0 %614
        %v616 = vadd.f32 %v527, %v546
        %v617 = vadd.f32 %v616, %v565
        %v618 = vadd.f32 %v617, %v584
        %619 = vadd.xlane.f32.xlu0 %v618
        %v620 = vpop.xlane.xlu0 %619
        %v621 = vadd.f32 %v530, %v549
        %v622 = vadd.f32 %v621, %v568
        %v623 = vadd.f32 %v622, %v587
        %624 = vadd.xlane.f32.xlu0 %v623
        %v625 = vpop.xlane.xlu0 %624
        %v626 = vadd.f32 %v532, %v551
        %v627 = vadd.f32 %v626, %v570
        %v628 = vadd.f32 %v627, %v589
        %629 = vadd.xlane.f32.xlu0 %v628
        %v630 = vpop.xlane.xlu0 %629
        %v631 = vadd.f32 %v607, %v615
        %v632 = vadd.f32 %v608, %v620
        %v633 = vadd.f32 %v609, %v625
        %v634 = vadd.f32 %v610, %v630
        %vm635 = vcmask 7168
        %636 = vst.msk [vmem:[#allocation2] sm:$0xff] %vm635, %v631
        %637 = vst.msk [vmem:[#allocation2 + $0x8] sm:$0xff] %vm635, %v632
        %638 = vst.msk [vmem:[#allocation2 + $0x10] sm:$0xff] %vm635, %v633
        %639 = vst.msk [vmem:[#allocation2 + $0x18] sm:$0xff] %vm635, %v634
        %v640 = vld [vmem:[#allocation3] sm:$0xff]
        %v641 = vld [vmem:[#allocation3 + $0x8] sm:$0xff]
        %v642 = vld [vmem:[#allocation3 + $0x10] sm:$0xff]
        %v643 = vld [vmem:[#allocation3 + $0x18] sm:$0xff]
        %v644 = vmul.f32 %v525, %v525
        %v645 = vmul.f32 %v544, %v544
        %v646 = vmul.f32 %v563, %v563
        %v647 = vmul.f32 %v582, %v582
        %v648 = vmul.f32 %v527, %v527
        %v649 = vmul.f32 %v546, %v546
        %v650 = vmul.f32 %v565, %v565
        %v651 = vmul.f32 %v584, %v584
        %v652 = vmul.f32 %v530, %v530
        %v653 = vmul.f32 %v549, %v549
        %v654 = vmul.f32 %v568, %v568
        %v655 = vmul.f32 %v587, %v587
        %v656 = vmul.f32 %v532, %v532
        %v657 = vmul.f32 %v551, %v551
        %v658 = vmul.f32 %v570, %v570
        %v659 = vmul.f32 %v589, %v589
        %v660 = vadd.f32 %v644, %v645
        %v661 = vadd.f32 %v660, %v646
        %v662 = vadd.f32 %v661, %v647
        %663 = vadd.xlane.f32.xlu0 %v662
        %v664 = vpop.xlane.xlu0 %663
        %v665 = vadd.f32 %v648, %v649
        %v666 = vadd.f32 %v665, %v650
        %v667 = vadd.f32 %v666, %v651
        %668 = vadd.xlane.f32.xlu0 %v667
        %v669 = vpop.xlane.xlu0 %668
        %v670 = vadd.f32 %v652, %v653
        %v671 = vadd.f32 %v670, %v654
        %v672 = vadd.f32 %v671, %v655
        %673 = vadd.xlane.f32.xlu0 %v672
        %v674 = vpop.xlane.xlu0 %673
        %v675 = vadd.f32 %v656, %v657
        %v676 = vadd.f32 %v675, %v658
        %v677 = vadd.f32 %v676, %v659
        %678 = vadd.xlane.f32.xlu0 %v677
        %v679 = vpop.xlane.xlu0 %678
        %v680 = vadd.f32 %v640, %v664
        %v681 = vadd.f32 %v641, %v669
        %v682 = vadd.f32 %v642, %v674
        %v683 = vadd.f32 %v643, %v679
        %684 = vst.msk [vmem:[#allocation3] sm:$0xff] %vm635, %v680
        %685 = vst.msk [vmem:[#allocation3 + $0x8] sm:$0xff] %vm635, %v681
        %686 = vst.msk [vmem:[#allocation3 + $0x10] sm:$0xff] %vm635, %v682
        %687 = vst.msk [vmem:[#allocation3 + $0x18] sm:$0xff] %vm635, %v683
        // Predicated region
        $region56: #{new_up_transition.2} parent=46 // pred_check
          %p688 = pneg %p313
        $region57: #{new_up_transition.2} parent=46 // pred_check_branch
          %690 = sbr.rel (%p688) target = $region59
        $region58: #{new_up_transition.2} parent=46 // pred_region
          %v691 = vld [vmem:[#allocation2] sm:$0xff]
          %v692 = vld [vmem:[#allocation2 + $0x8] sm:$0xff]
          %v693 = vld [vmem:[#allocation2 + $0x10] sm:$0xff]
          %v694 = vld [vmem:[#allocation2 + $0x18] sm:$0xff]
          %695 = vst.msk [vmem:[%s306] sm:$0xff] %vm635, %v691
          %696 = vst.msk [vmem:[%s306 + $0x8] sm:$0xff] %vm635, %v692
          %697 = vst.msk [vmem:[%s306 + $0x10] sm:$0xff] %vm635, %v693
          %698 = vst.msk [vmem:[%s306 + $0x18] sm:$0xff] %vm635, %v694
          %v699 = vld [vmem:[#allocation3] sm:$0xff]
          %v700 = vld [vmem:[#allocation3 + $0x8] sm:$0xff]
          %v701 = vld [vmem:[#allocation3 + $0x10] sm:$0xff]
          %v702 = vld [vmem:[#allocation3 + $0x18] sm:$0xff]
          %703 = vst.msk [vmem:[%s311] sm:$0xff] %vm635, %v699
          %704 = vst.msk [vmem:[%s311 + $0x8] sm:$0xff] %vm635, %v700
          %705 = vst.msk [vmem:[%s311 + $0x10] sm:$0xff] %vm635, %v701
          %706 = vst.msk [vmem:[%s311 + $0x18] sm:$0xff] %vm635, %v702
        $region59: #{new_up_transition.2} parent=46 // pred_fallthru
          _
        %s707 = sand.u32 %s87, 1
        %s708 = sand.u32 %s87, 1
        %s709 = smul.addr %s708, 64
        %s710 = scalar_lea.vmem [#allocation5], %s709
        %p711 = scmp.lt.s32.totalorder %s20, 1
        %s712 = scalar_select %p711, %s20, 1
        %s713 = smul.addr %s712, 4
        %s714 = smul.addr %s713, 8
        %s715 = scalar_lea.vmem %s3, %s714
        %p716 = scmp.lt.s32.totalorder %s20, 1
        %s717 = scalar_select %p716, %s20, 1
        %s718 = smul.addr %s717, 4
        %s719 = smul.addr %s718, 8
        %s720 = scalar_lea.vmem %s4, %s719
        // Predicated region
        $region60: #{new_up_transition.2} parent=46 // pred_check
          %p721 = pneg %p97
        $region61: #{new_up_transition.2} parent=46 // pred_check_branch
          %723 = sbr.rel (%p721) target = $region63
        $region62: #{new_up_transition.2} parent=46 // pred_region
          %s724 = sadd.s32 %s20, %s21
          %s725 = smul.u32 4, %s724
          %s726 = smul.addr %s725, 4
          %s727 = scalar_lea.vmem %s2, %s726
          // Predicated region
          $region64: #{new_up_transition.2} parent=62 // pred_check
            _
          $region65: #{new_up_transition.2} parent=62 // pred_check_branch
            %729 = sbr.rel (0) target = $region67
          $region66: #{new_up_transition.2} parent=62 // pred_region
            // Predicated region
            $region68: #{new_up_transition.2} parent=66 // pred_check
              _
            $region69: #{new_up_transition.2} parent=66 // pred_check_branch
              %731 = sbr.rel (0) target = $region71
            $region70: #{new_up_transition.2} parent=66 // pred_region
              loop: start=0, step=1, limit=1
              $region72: #{new_up_transition.2} parent=70 // loop_pre_header
                _
              $region73: #{new_up_transition.2} parent=70 // loop_header
                %s733 = sphi 0, %s737
                %p734 = scmp.ge.s32.totalorder %s733, 1
                %s738 = sphi %s710, %s710
                %s739 = sphi %s727, %s727
              $region74: #{new_up_transition.2} parent=70 // loop_header_branch
                %736 = sbr.rel (%p734) target = $region78
              $region75: #{new_up_transition.2} parent=70 // loop_body
                %v740 = vld [vmem:[%s738] sm:$0xff]
                %741 = vst [vmem:[%s739] sm:$0xff] %v740
                %v742 = vld [vmem:[%s738 + $0x8] sm:$0xff]
                %743 = vst [vmem:[%s739 + $0x8] sm:$0xff] %v742
                %v744 = vld [vmem:[%s738 + $0x10] sm:$0xff]
                %745 = vst [vmem:[%s739 + $0x20] sm:$0xff] %v744
                %v746 = vld [vmem:[%s738 + $0x18] sm:$0xff]
                %747 = vst [vmem:[%s739 + $0x28] sm:$0xff] %v746
                %v748 = vld [vmem:[%s738 + $0x20] sm:$0xff]
                %749 = vst [vmem:[%s739 + $0x40] sm:$0xff] %v748
                %v750 = vld [vmem:[%s738 + $0x28] sm:$0xff]
                %751 = vst [vmem:[%s739 + $0x48] sm:$0xff] %v750
                %v752 = vld [vmem:[%s738 + $0x30] sm:$0xff]
                %753 = vst [vmem:[%s739 + $0x60] sm:$0xff] %v752
                %v754 = vld [vmem:[%s738 + $0x38] sm:$0xff]
                %755 = vst [vmem:[%s739 + $0x68] sm:$0xff] %v754
              $region76: #{new_up_transition.2} parent=70 // loop_footer
                %s737 = sadd.s32 1, %s733
              $region77: #{new_up_transition.2} parent=70 // loop_footer_branch
                %732 = sbr.rel target = $region73
              $region78: #{new_up_transition.2} parent=70 // loop_exit
                _
            $region71: #{new_up_transition.2} parent=66 // pred_fallthru
              _
            // Predicated region
            $region79: #{new_up_transition.2} parent=66 // pred_check
              _
            $region80: #{new_up_transition.2} parent=66 // pred_check_branch
              %757 = sbr.rel target = $region82
            $region81: #{new_up_transition.2} parent=66 // pred_region
              _
            $region82: #{new_up_transition.2} parent=66 // pred_fallthru
              _
          $region67: #{new_up_transition.2} parent=62 // pred_fallthru
            _
          %758 = vnop
        $region63: #{new_up_transition.2} parent=46 // pred_fallthru
          _
        // Predicated region
        $region83: #{new_up_transition.2} parent=46 // pred_check
          %p759 = pneg %p123
        $region84: #{new_up_transition.2} parent=46 // pred_check_branch
          %761 = sbr.rel (%p759) target = $region86
        $region85: #{new_up_transition.2} parent=46 // pred_region
          _
        $region86: #{new_up_transition.2} parent=46 // pred_fallthru
          _
        // Predicated region
        $region87: #{new_up_transition.2} parent=46 // pred_check
          %p762 = pneg %p149
        $region88: #{new_up_transition.2} parent=46 // pred_check_branch
          %764 = sbr.rel (%p762) target = $region90
        $region89: #{new_up_transition.2} parent=46 // pred_region
          _
        $region90: #{new_up_transition.2} parent=46 // pred_fallthru
          _
      $region47: #{new_up_transition.2} parent=5 // pred_fallthru
        _
      %p765 = scmp.le.s32.totalorder 2, %s11
      // Predicated region
      $region91: #{new_up_transition.2} parent=5 // pred_check
        %p766 = pneg %p765
      $region92: #{new_up_transition.2} parent=5 // pred_check_branch
        %768 = sbr.rel (%p766) target = $region94
      $region93: #{new_up_transition.2} parent=5 // pred_region
        %s769 = ssub.s32 %s11, 2
        // Predicated region
        $region95: #{new_up_transition.2} parent=93 // pred_check
          %p770 = pneg %p103
        $region96: #{new_up_transition.2} parent=93 // pred_check_branch
          %772 = sbr.rel (%p770) target = $region98
        $region97: #{new_up_transition.2} parent=93 // pred_region
          %s773 = sand.u32 %s88, 1
          %s774 = sand.u32 %s88, 1
          %s775 = smul.addr %s774, 64
          %s776 = scalar_lea.vmem [#allocation5], %s775
        $region98: #{new_up_transition.2} parent=93 // pred_fallthru
          _
        // Predicated region
        $region99: #{new_up_transition.2} parent=93 // pred_check
          %p777 = pneg %p129
        $region100: #{new_up_transition.2} parent=93 // pred_check_branch
          %779 = sbr.rel (%p777) target = $region102
        $region101: #{new_up_transition.2} parent=93 // pred_region
          %p780 = scmp.lt.s32.totalorder %s22, 1
          %s781 = scalar_select %p780, %s22, 1
          %s782 = smul.addr %s781, 4
          %s783 = smul.addr %s782, 8
          %s784 = scalar_lea.vmem %s3, %s783
        $region102: #{new_up_transition.2} parent=93 // pred_fallthru
          _
        // Predicated region
        $region103: #{new_up_transition.2} parent=93 // pred_check
          %p785 = pneg %p155
        $region104: #{new_up_transition.2} parent=93 // pred_check_branch
          %787 = sbr.rel (%p785) target = $region106
        $region105: #{new_up_transition.2} parent=93 // pred_region
          %p788 = scmp.lt.s32.totalorder %s22, 1
          %s789 = scalar_select %p788, %s22, 1
          %s790 = smul.addr %s789, 4
          %s791 = smul.addr %s790, 8
          %s792 = scalar_lea.vmem %s4, %s791
        $region106: #{new_up_transition.2} parent=93 // pred_fallthru
          _
      $region94: #{new_up_transition.2} parent=5 // pred_fallthru
        _
    $region6: #{new_up_transition.2} parent=1 // loop_footer
      %s15 = sadd.s32 1, %s11
    $region7: #{new_up_transition.2} parent=1 // loop_footer_branch
      %10 = sbr.rel target = $region3
    $region8: #{new_up_transition.2} parent=1 // loop_exit
      _

</llo_original>
